<compile_context>
chip_gen: v5e
topology: v5e:2x2
jax: 0.10.0
libtpu: 0.0.40
codegen_flags: <defaults>
</compile_context>

<pallas_src>
import math

import jax
import jax.numpy as jnp
from jax.experimental import pallas as pl
from jax.experimental.pallas import tpu as pltpu

# ---- small BERT config ------------------------------------------------------
B, S, H = 2, 8, 32          # batch, seq_len, hidden_size
NH = 4                      # num_attention_heads
DH = H // NH                # head dim
I = 64                      # intermediate_size
L = 2                       # num_hidden_layers
VOCAB = 100
TYPE_VOCAB = 2
MAX_POS = 16
LN_EPS = 1e-12
INIT_RANGE = 0.02

# lane-padded widths (vreg lane width = 128)
HP = 128                    # padded hidden
IP = 128                    # padded intermediate
BS = B * S                  # flattened token count


# ---- in-kernel helpers ------------------------------------------------------
def _layer_norm(x, g, b):
    # BertLayerNorm over the TRUE hidden width H. Lanes >= H are exactly zero
    # by construction (weights/biases/gammas zero-padded), so padded-lane sums
    # equal the true sums; divide by H, not HP. Single-pass variance
    # (E[x^2]-E[x]^2) is used deliberately: a two-pass (x-u)^2 would pick up
    # u^2 contributions from the zero-padded lanes unless masked.
    inv_h = 1.0 / H
    u = jnp.sum(x, axis=-1, keepdims=True) * inv_h
    var = jnp.sum(x * x, axis=-1, keepdims=True) * inv_h - u * u
    return (x - u) * jax.lax.rsqrt(var + LN_EPS) * g + b


def _gelu(x):
    # TODO(synk): original BERT uses erf-based GELU; tanh approximation used
    # here (numerical difference ~1e-3).
    c = 0.7978845608028654  # sqrt(2/pi)
    return 0.5 * x * (1.0 + jnp.tanh(c * (x + 0.044715 * x * x * x)))


# ---- the encoder kernel (one grid step == one sequence, all layers) ---------
def bert_encoder_kernel(emb_ref, mask_ref, eg_ref, eb_ref,
                        wqkv_ref, bqkv_ref, waoh_ref, bao_ref, g1_ref, b1_ref,
                        wi_ref, bi_ref, wo_ref, bo_ref, g2_ref, b2_ref,
                        out_ref):
    # Additive key bias for this sequence, hoisted and pre-broadcast once
    # (JAX does not CSE broadcast_in_dim — do not rebuild it per layer/head).
    mvals = mask_ref[...]                                   # (1, 8, 128) f32
    bias = jnp.broadcast_to(mvals[0, 0:1, 0:S], (NH, S, S))  # (NH, S, S)

    # Embedding LayerNorm -> layer-0 input. (S, HP) f32, lane-dense.
    x = _layer_norm(emb_ref[...], eg_ref[...], eb_ref[...])

    for layer in range(L):          # static unroll; all weights resident
        x_bf = x.astype(jnp.bfloat16)

        # Fused QKV projection: one lane-dense (S,HP)@(HP,3HP) matmul.
        # 1/sqrt(DH) is pre-folded into the Q columns at pack time.
        qkv = jnp.dot(x_bf, wqkv_ref[layer],
                      preferred_element_type=jnp.float32) + bqkv_ref[layer]

        # Gather heads to a leading batch axis: (NH, S, DH).
        qh = jnp.stack([qkv[:, 0 * HP + h * DH: 0 * HP + (h + 1) * DH]
                        for h in range(NH)], axis=0).astype(jnp.bfloat16)
        kh = jnp.stack([qkv[:, 1 * HP + h * DH: 1 * HP + (h + 1) * DH]
                        for h in range(NH)], axis=0).astype(jnp.bfloat16)
        vh = jnp.stack([qkv[:, 2 * HP + h * DH: 2 * HP + (h + 1) * DH]
                        for h in range(NH)], axis=0).astype(jnp.bfloat16)

        # Head-batched scores / softmax / context: one dot_general each,
        # batched over NH heads; K-transpose folded into the contraction.
        sc = jnp.einsum('hqd,hkd->hqk', qh, kh,
                        preferred_element_type=jnp.float32) + bias
        m = jnp.max(sc, axis=-1, keepdims=True)
        e = jnp.exp(sc - m)
        p = e * pl.reciprocal(jnp.sum(e, axis=-1, keepdims=True), approx=True)
        ctx = jnp.einsum('hqk,hkd->hqd', p.astype(jnp.bfloat16), vh,
                         preferred_element_type=jnp.float32)   # (NH, S, DH)

        # Output projection: ONE batched matmul against head-split Wao
        # (NH, DH, HP), then a cheap 4-slab reduce over the head axis.
        attn = jnp.einsum('hsd,hdo->hso', ctx.astype(jnp.bfloat16),
                          waoh_ref[layer],
                          preferred_element_type=jnp.float32).sum(axis=0)
        attn = attn + bao_ref[layer]                           # (S, HP)

        # Attention output: residual + LayerNorm.
        h1 = _layer_norm(attn + x, g1_ref[layer], b1_ref[layer])

        # Feed-forward + residual + LayerNorm.
        inter = _gelu(jnp.dot(h1.astype(jnp.bfloat16), wi_ref[layer],
                              preferred_element_type=jnp.float32)
                      + bi_ref[layer])
        ffo = jnp.dot(inter.astype(jnp.bfloat16), wo_ref[layer],
                      preferred_element_type=jnp.float32) + bo_ref[layer]
        x = _layer_norm(ffo + h1, g2_ref[layer], b2_ref[layer])

        # TODO(synk): dropout layers are identity (eval mode).
        out_ref[layer] = x          # lane-dense (8,128) store per layer


# ---- wrapper: padding, weight packing, pallas_call --------------------------
def _pad_to(x, tail):
    """Zero-pad the trailing dims of x up to `tail`."""
    n = len(tail)
    pads = [(0, 0)] * (x.ndim - n)
    pads += [(0, t - s) for s, t in zip(x.shape[x.ndim - n:], tail)]
    return jnp.pad(x, pads)


def pack_encoder_params(p):
    """Lane-pad params, fold 1/sqrt(DH) into Q, pack QKV, split Wao by head,
    cast matmul weights to bf16.  Call ONCE (not per forward)."""
    wdt = jnp.bfloat16
    scale = 1.0 / math.sqrt(DH)
    kp = {}
    kp["eg"] = _pad_to(p["eg"], (1, HP)).astype(jnp.float32)
    kp["eb"] = _pad_to(p["eb"], (1, HP)).astype(jnp.float32)
    wq = _pad_to(p["wq"], (HP, HP)) * scale       # fold attention scale into Q
    wk = _pad_to(p["wk"], (HP, HP))
    wv = _pad_to(p["wv"], (HP, HP))
    kp["wqkv"] = jnp.concatenate([wq, wk, wv], axis=-1).astype(wdt)  # (L,HP,3HP)
    kp["bqkv"] = jnp.concatenate([_pad_to(p["bq"], (1, HP)) * scale,
                                  _pad_to(p["bk"], (1, HP)),
                                  _pad_to(p["bv"], (1, HP))],
                                 axis=-1).astype(jnp.float32)        # (L,1,3HP)
    # Wao split per head: rows stay un-padded (H), columns lane-padded.
    wao = _pad_to(p["wao"], (H, HP))                                 # (L,H,HP)
    kp["waoh"] = wao.reshape(L, NH, DH, HP).astype(wdt)              # (L,NH,DH,HP)
    kp["wi"] = _pad_to(p["wi"], (HP, IP)).astype(wdt)
    kp["wo"] = _pad_to(p["wo"], (IP, HP)).astype(wdt)
    for name in ("bao", "g1", "b1", "bo", "g2", "b2"):
        kp[name] = _pad_to(p[name], (1, HP)).astype(jnp.float32)
    kp["bi"] = _pad_to(p["bi"], (1, IP)).astype(jnp.float32)
    return kp


def bert_encoder_pallas(emb_sum, mask_add, kp):
    """emb_sum: (B,S,H) pre-LN embedding sum; mask_add: (B,S) additive mask;
    kp: pre-packed encoder params from pack_encoder_params()."""
    emb_p = _pad_to(emb_sum.astype(jnp.float32).reshape(BS, H), (BS, HP))
    # (B, 8, 128): row 0 of the query axis holds the per-key bias.
    mask_p = jnp.pad(mask_add.astype(jnp.float32)[:, None, :],
                     ((0, 0), (0, 7), (0, 128 - S)))

    const_args = [emb_p, mask_p, kp["eg"], kp["eb"]]
    layer_names = ("wqkv", "bqkv", "waoh", "bao", "g1", "b1",
                   "wi", "bi", "wo", "bo", "g2", "b2")
    layer_args = [kp[n] for n in layer_names]

    in_specs = [
        pl.BlockSpec((S, HP), lambda b: (b, 0)),        # this sequence's embeddings
        pl.BlockSpec((1, 8, 128), lambda b: (b, 0, 0)), # this sequence's key bias
        pl.BlockSpec((1, HP), lambda b: (0, 0)),        # emb LN gamma
        pl.BlockSpec((1, HP), lambda b: (0, 0)),        # emb LN beta
    ]
    # All layer-weight stacks are fully resident (constant index maps).
    for a in layer_args:
        in_specs.append(pl.BlockSpec(a.shape, lambda b, n=a.ndim: (0,) * n))

    out = pl.pallas_call(
        bert_encoder_kernel,
        out_shape=jax.ShapeDtypeStruct((L, BS, HP), jnp.float32),
        grid_spec=pltpu.PrefetchScalarGridSpec(
            num_scalar_prefetch=0,
            grid=(B,),                                  # one sequence per step
            in_specs=in_specs,
            out_specs=pl.BlockSpec((L, S, HP), lambda b: (0, b, 0)),
        ),
        compiler_params=pltpu.CompilerParams(
            dimension_semantics=("parallel",)),         # v7x: one sequence per TC
    )(*const_args, *layer_args)

    # strip lane padding: (L, BS, HP) -> (L, B, S, H)
    return out[:, :, :H].reshape(L, B, S, H)


# ---- glue: embeddings + mask prep (plain JAX) -------------------------------
def bert_model_forward(input_ids, token_type_ids, attention_mask, params,
                       packed, output_all_encoded_layers=True):
    if attention_mask is None:
        attention_mask = jnp.ones_like(input_ids)
    if token_type_ids is None:
        token_type_ids = jnp.zeros_like(input_ids)
    positions = jnp.arange(S, dtype=jnp.int32)[None, :].repeat(B, axis=0)
    emb_sum = (params["word_emb"][input_ids]
               + params["pos_emb"][positions]
               + params["type_emb"][token_type_ids])                   # (B,S,H)
    mask_add = (1.0 - attention_mask.astype(jnp.float32)) * -10000.0   # (B,S)

    all_layers = bert_encoder_pallas(emb_sum, mask_add, packed)        # (L,B,S,H)
    if output_all_encoded_layers:
        return [all_layers[i] for i in range(L)]
    return all_layers[-1]


# ---- pure-JAX f32 reference for verification --------------------------------
def bert_model_reference(input_ids, token_type_ids, attention_mask, params):
    positions = jnp.arange(S, dtype=jnp.int32)[None, :].repeat(B, axis=0)
    emb = (params["word_emb"][input_ids]
           + params["pos_emb"][positions]
           + params["type_emb"][token_type_ids]).reshape(BS, H)
    mask_add = (1.0 - attention_mask.astype(jnp.float32)) * -10000.0

    def ln(x, g, b):
        u = x.mean(-1, keepdims=True)
        s = ((x - u) ** 2).mean(-1, keepdims=True)
        return (x - u) / jnp.sqrt(s + LN_EPS) * g + b

    h = ln(emb, params["eg"], params["eb"])
    outs = []
    scale = 1.0 / math.sqrt(DH)
    for i in range(L):
        x = h
        q = (x @ params["wq"][i] + params["bq"][i]).reshape(B, S, NH, DH).transpose(0, 2, 1, 3)
        k = (x @ params["wk"][i] + params["bk"][i]).reshape(B, S, NH, DH).transpose(0, 2, 1, 3)
        v = (x @ params["wv"][i] + params["bv"][i]).reshape(B, S, NH, DH).transpose(0, 2, 1, 3)
        sc = jnp.einsum("bhqd,bhkd->bhqk", q, k) * scale + mask_add[:, None, None, :]
        p = jax.nn.softmax(sc, axis=-1)
        ctx = jnp.einsum("bhqk,bhkd->bhqd", p, v).transpose(0, 2, 1, 3).reshape(BS, H)
        attn = ctx @ params["wao"][i] + params["bao"][i]
        h1 = ln(attn + x, params["g1"][i], params["b1"][i])
        inter = _gelu(h1 @ params["wi"][i] + params["bi"][i])
        ffo = inter @ params["wo"][i] + params["bo"][i]
        h = ln(ffo + h1, params["g2"][i], params["b2"][i])
        outs.append(h.reshape(B, S, H))
    return outs


# ---- deterministic parameter init (init_bert_weights semantics) -------------
def make_params(key):
    ks = iter(jax.random.split(key, 16))

    def normal(shape):
        return jax.random.normal(next(ks), shape, jnp.float32) * INIT_RANGE

    return dict(
        word_emb=normal((VOCAB, H)),
        pos_emb=normal((MAX_POS, H)),
        type_emb=normal((TYPE_VOCAB, H)),
        eg=jnp.ones((1, H), jnp.float32),
        eb=jnp.zeros((1, H), jnp.float32),
        wq=normal((L, H, H)), bq=jnp.zeros((L, 1, H), jnp.float32),
        wk=normal((L, H, H)), bk=jnp.zeros((L, 1, H), jnp.float32),
        wv=normal((L, H, H)), bv=jnp.zeros((L, 1, H), jnp.float32),
        wao=normal((L, H, H)), bao=jnp.zeros((L, 1, H), jnp.float32),
        g1=jnp.ones((L, 1, H), jnp.float32), b1=jnp.zeros((L, 1, H), jnp.float32),
        wi=normal((L, H, I)), bi=jnp.zeros((L, 1, I), jnp.float32),
        wo=normal((L, I, H)), bo=jnp.zeros((L, 1, H), jnp.float32),
        g2=jnp.ones((L, 1, H), jnp.float32), b2=jnp.zeros((L, 1, H), jnp.float32),
    )


if __name__ == "__main__":
    key = jax.random.PRNGKey(0)
    pkey, ikey = jax.random.split(key)
    params = make_params(pkey)

    # Pack / pad / cast encoder weights ONCE, outside the forward path.
    packed = pack_encoder_params(params)

    input_ids = jax.random.randint(ikey, (B, S), 0, VOCAB, dtype=jnp.int32)
    token_type_ids = jnp.concatenate(
        [jnp.zeros((B, S // 2), jnp.int32), jnp.ones((B, S // 2), jnp.int32)], axis=1)
    attention_mask = jnp.array(
        [[1] * S, [1] * (S - 2) + [0, 0]], dtype=jnp.int32)

    encoded_layers = bert_model_forward(
        input_ids, token_type_ids, attention_mask, params, packed,
        output_all_encoded_layers=True)
    encoded_layers = jax.block_until_ready(encoded_layers)

    ref_layers = bert_model_reference(input_ids, token_type_ids, attention_mask, params)
    # bf16 matmul operands + approx reciprocal -> small deviation vs f32 reference
    for got, ref in zip(encoded_layers, ref_layers):
        assert jnp.allclose(got, ref, atol=1e-2, rtol=1e-2), "mismatch vs reference"

    print("KERNEL_OK")
</pallas_src>

<mosaic_0001>
module attributes {stable_mosaic.version = 11 : i64} {
  func.func @bert_encoder_kernel(%arg0: i32, %arg1: memref<8x128xf32, #tpu.memory_space<vmem>>, %arg2: memref<1x8x128xf32, #tpu.memory_space<vmem>>, %arg3: memref<1x128xf32, #tpu.memory_space<vmem>>, %arg4: memref<1x128xf32, #tpu.memory_space<vmem>>, %arg5: memref<2x128x384xbf16, #tpu.memory_space<vmem>>, %arg6: memref<2x1x384xf32, #tpu.memory_space<vmem>>, %arg7: memref<2x4x8x128xbf16, #tpu.memory_space<vmem>>, %arg8: memref<2x1x128xf32, #tpu.memory_space<vmem>>, %arg9: memref<2x1x128xf32, #tpu.memory_space<vmem>>, %arg10: memref<2x1x128xf32, #tpu.memory_space<vmem>>, %arg11: memref<2x128x128xbf16, #tpu.memory_space<vmem>>, %arg12: memref<2x1x128xf32, #tpu.memory_space<vmem>>, %arg13: memref<2x128x128xbf16, #tpu.memory_space<vmem>>, %arg14: memref<2x1x128xf32, #tpu.memory_space<vmem>>, %arg15: memref<2x1x128xf32, #tpu.memory_space<vmem>>, %arg16: memref<2x1x128xf32, #tpu.memory_space<vmem>>, %arg17: memref<2x8x128xf32, #tpu.memory_space<vmem>>) attributes {dimension_semantics = [#tpu.dimension_semantics<parallel>], iteration_bounds = array<i64: 2>, scalar_prefetch = 0 : i64, scratch_operands = 0 : i64, tpu.core_type = #tpu.core_type<tc>, window_params = [{transform_indices = @transform_0, window_bounds = array<i64: 8, 128>}, {transform_indices = @transform_1, window_bounds = array<i64: 1, 8, 128>}, {pipeline_mode = #tpu.pipeline_mode<synchronous>, transform_indices = @transform_2, window_bounds = array<i64: 1, 128>}, {pipeline_mode = #tpu.pipeline_mode<synchronous>, transform_indices = @transform_3, window_bounds = array<i64: 1, 128>}, {pipeline_mode = #tpu.pipeline_mode<synchronous>, transform_indices = @transform_4, window_bounds = array<i64: 2, 128, 384>}, {pipeline_mode = #tpu.pipeline_mode<synchronous>, transform_indices = @transform_5, window_bounds = array<i64: 2, 1, 384>}, {pipeline_mode = #tpu.pipeline_mode<synchronous>, transform_indices = @transform_6, window_bounds = array<i64: 2, 4, 8, 128>}, {pipeline_mode = #tpu.pipeline_mode<synchronous>, transform_indices = @transform_7, window_bounds = array<i64: 2, 1, 128>}, {pipeline_mode = #tpu.pipeline_mode<synchronous>, transform_indices = @transform_8, window_bounds = array<i64: 2, 1, 128>}, {pipeline_mode = #tpu.pipeline_mode<synchronous>, transform_indices = @transform_9, window_bounds = array<i64: 2, 1, 128>}, {pipeline_mode = #tpu.pipeline_mode<synchronous>, transform_indices = @transform_10, window_bounds = array<i64: 2, 128, 128>}, {pipeline_mode = #tpu.pipeline_mode<synchronous>, transform_indices = @transform_11, window_bounds = array<i64: 2, 1, 128>}, {pipeline_mode = #tpu.pipeline_mode<synchronous>, transform_indices = @transform_12, window_bounds = array<i64: 2, 128, 128>}, {pipeline_mode = #tpu.pipeline_mode<synchronous>, transform_indices = @transform_13, window_bounds = array<i64: 2, 1, 128>}, {pipeline_mode = #tpu.pipeline_mode<synchronous>, transform_indices = @transform_14, window_bounds = array<i64: 2, 1, 128>}, {pipeline_mode = #tpu.pipeline_mode<synchronous>, transform_indices = @transform_15, window_bounds = array<i64: 2, 1, 128>}, {transform_indices = @transform_16, window_bounds = array<i64: 2, 8, 128>}]} {
    %c0 = arith.constant 0 : index
    %c0_0 = arith.constant 0 : index
    %c0_1 = arith.constant 0 : index
    %0 = vector.load %arg2[%c0, %c0_0, %c0_1] : memref<1x8x128xf32, #tpu.memory_space<vmem>>, vector<1x8x128xf32>
    %1 = vector.extract_strided_slice %0 {offsets = [0, 0, 0], sizes = [1, 1, 8], strides = [1, 1, 1]} : vector<1x8x128xf32> to vector<1x1x8xf32>
    %2 = vector.shape_cast %1 : vector<1x1x8xf32> to vector<1x8xf32>
    %3 = vector.shape_cast %2 : vector<1x8xf32> to vector<1x1x8xf32>
    %4 = vector.broadcast %3 : vector<1x1x8xf32> to vector<4x8x8xf32>
    %c0_2 = arith.constant 0 : index
    %c0_3 = arith.constant 0 : index
    %5 = vector.load %arg1[%c0_2, %c0_3] : memref<8x128xf32, #tpu.memory_space<vmem>>, vector<8x128xf32>
    %c0_4 = arith.constant 0 : index
    %c0_5 = arith.constant 0 : index
    %6 = vector.load %arg3[%c0_4, %c0_5] : memref<1x128xf32, #tpu.memory_space<vmem>>, vector<1x128xf32>
    %c0_6 = arith.constant 0 : index
    %c0_7 = arith.constant 0 : index
    %7 = vector.load %arg4[%c0_6, %c0_7] : memref<1x128xf32, #tpu.memory_space<vmem>>, vector<1x128xf32>
    %cst = arith.constant dense<0.000000e+00> : vector<8xf32>
    %8 = vector.multi_reduction <add>, %5, %cst [1] : vector<8x128xf32> to vector<8xf32>
    %9 = vector.shape_cast %8 : vector<8xf32> to vector<8x1xf32>
    %cst_8 = arith.constant 3.125000e-02 : f32
    %10 = vector.broadcast %cst_8 : f32 to vector<8x1xf32>
    %11 = arith.mulf %9, %10 : vector<8x1xf32>
    %12 = arith.mulf %5, %5 : vector<8x128xf32>
    %cst_9 = arith.constant dense<0.000000e+00> : vector<8xf32>
    %13 = vector.multi_reduction <add>, %12, %cst_9 [1] : vector<8x128xf32> to vector<8xf32>
    %14 = vector.shape_cast %13 : vector<8xf32> to vector<8x1xf32>
    %cst_10 = arith.constant 3.125000e-02 : f32
    %15 = vector.broadcast %cst_10 : f32 to vector<8x1xf32>
    %16 = arith.mulf %14, %15 : vector<8x1xf32>
    %17 = arith.mulf %11, %11 : vector<8x1xf32>
    %18 = arith.subf %16, %17 : vector<8x1xf32>
    %19 = vector.broadcast %11 : vector<8x1xf32> to vector<8x128xf32>
    %20 = arith.subf %5, %19 : vector<8x128xf32>
    %cst_11 = arith.constant 9.99999996E-13 : f32
    %21 = vector.broadcast %cst_11 : f32 to vector<8x1xf32>
    %22 = arith.addf %18, %21 : vector<8x1xf32>
    %23 = math.rsqrt %22 : vector<8x1xf32>
    %24 = vector.broadcast %23 : vector<8x1xf32> to vector<8x128xf32>
    %25 = arith.mulf %20, %24 : vector<8x128xf32>
    %26 = vector.broadcast %6 : vector<1x128xf32> to vector<8x128xf32>
    %27 = arith.mulf %25, %26 : vector<8x128xf32>
    %28 = vector.broadcast %7 : vector<1x128xf32> to vector<8x128xf32>
    %29 = arith.addf %27, %28 : vector<8x128xf32>
    %30 = arith.truncf %29 : vector<8x128xf32> to vector<8x128xbf16>
    %c0_12 = arith.constant 0 : index
    %c0_13 = arith.constant 0 : index
    %c0_14 = arith.constant 0 : index
    %31 = vector.load %arg5[%c0_12, %c0_13, %c0_14] : memref<2x128x384xbf16, #tpu.memory_space<vmem>>, vector<1x128x384xbf16>
    %32 = vector.shape_cast %31 : vector<1x128x384xbf16> to vector<128x384xbf16>
    %cst_15 = arith.constant dense<0.000000e+00> : vector<8x384xf32>
    %33 = tpu.matmul %30, %32, %cst_15 {dimension_numbers = #tpu.dot_dimension_numbers<[1], [0], [0], [1], [0, 0, 1, 1], [], []>} : vector<8x128xbf16>, vector<128x384xbf16>, vector<8x384xf32> -> vector<8x384xf32>
    %c0_16 = arith.constant 0 : index
    %c0_17 = arith.constant 0 : index
    %c0_18 = arith.constant 0 : index
    %34 = vector.load %arg6[%c0_16, %c0_17, %c0_18] : memref<2x1x384xf32, #tpu.memory_space<vmem>>, vector<1x1x384xf32>
    %35 = vector.shape_cast %34 : vector<1x1x384xf32> to vector<1x384xf32>
    %36 = vector.broadcast %35 : vector<1x384xf32> to vector<8x384xf32>
    %37 = arith.addf %33, %36 : vector<8x384xf32>
    %38 = vector.extract_strided_slice %37 {offsets = [0, 0], sizes = [8, 8], strides = [1, 1]} : vector<8x384xf32> to vector<8x8xf32>
    %39 = vector.extract_strided_slice %37 {offsets = [0, 8], sizes = [8, 8], strides = [1, 1]} : vector<8x384xf32> to vector<8x8xf32>
    %40 = vector.extract_strided_slice %37 {offsets = [0, 16], sizes = [8, 8], strides = [1, 1]} : vector<8x384xf32> to vector<8x8xf32>
    %41 = vector.extract_strided_slice %37 {offsets = [0, 24], sizes = [8, 8], strides = [1, 1]} : vector<8x384xf32> to vector<8x8xf32>
    %42 = vector.shape_cast %38 : vector<8x8xf32> to vector<1x8x8xf32>
    %43 = vector.shape_cast %39 : vector<8x8xf32> to vector<1x8x8xf32>
    %44 = vector.shape_cast %40 : vector<8x8xf32> to vector<1x8x8xf32>
    %45 = vector.shape_cast %41 : vector<8x8xf32> to vector<1x8x8xf32>
    %46 = tpu.concatenate %42, %43, %44, %45 in 0 : vector<1x8x8xf32>, vector<1x8x8xf32>, vector<1x8x8xf32>, vector<1x8x8xf32> -> vector<4x8x8xf32>
    %47 = arith.truncf %46 : vector<4x8x8xf32> to vector<4x8x8xbf16>
    %48 = vector.extract_strided_slice %37 {offsets = [0, 128], sizes = [8, 8], strides = [1, 1]} : vector<8x384xf32> to vector<8x8xf32>
    %49 = vector.extract_strided_slice %37 {offsets = [0, 136], sizes = [8, 8], strides = [1, 1]} : vector<8x384xf32> to vector<8x8xf32>
    %50 = vector.extract_strided_slice %37 {offsets = [0, 144], sizes = [8, 8], strides = [1, 1]} : vector<8x384xf32> to vector<8x8xf32>
    %51 = vector.extract_strided_slice %37 {offsets = [0, 152], sizes = [8, 8], strides = [1, 1]} : vector<8x384xf32> to vector<8x8xf32>
    %52 = vector.shape_cast %48 : vector<8x8xf32> to vector<1x8x8xf32>
    %53 = vector.shape_cast %49 : vector<8x8xf32> to vector<1x8x8xf32>
    %54 = vector.shape_cast %50 : vector<8x8xf32> to vector<1x8x8xf32>
    %55 = vector.shape_cast %51 : vector<8x8xf32> to vector<1x8x8xf32>
    %56 = tpu.concatenate %52, %53, %54, %55 in 0 : vector<1x8x8xf32>, vector<1x8x8xf32>, vector<1x8x8xf32>, vector<1x8x8xf32> -> vector<4x8x8xf32>
    %57 = arith.truncf %56 : vector<4x8x8xf32> to vector<4x8x8xbf16>
    %58 = vector.extract_strided_slice %37 {offsets = [0, 256], sizes = [8, 8], strides = [1, 1]} : vector<8x384xf32> to vector<8x8xf32>
    %59 = vector.extract_strided_slice %37 {offsets = [0, 264], sizes = [8, 8], strides = [1, 1]} : vector<8x384xf32> to vector<8x8xf32>
    %60 = vector.extract_strided_slice %37 {offsets = [0, 272], sizes = [8, 8], strides = [1, 1]} : vector<8x384xf32> to vector<8x8xf32>
    %61 = vector.extract_strided_slice %37 {offsets = [0, 280], sizes = [8, 8], strides = [1, 1]} : vector<8x384xf32> to vector<8x8xf32>
    %62 = vector.shape_cast %58 : vector<8x8xf32> to vector<1x8x8xf32>
    %63 = vector.shape_cast %59 : vector<8x8xf32> to vector<1x8x8xf32>
    %64 = vector.shape_cast %60 : vector<8x8xf32> to vector<1x8x8xf32>
    %65 = vector.shape_cast %61 : vector<8x8xf32> to vector<1x8x8xf32>
    %66 = tpu.concatenate %62, %63, %64, %65 in 0 : vector<1x8x8xf32>, vector<1x8x8xf32>, vector<1x8x8xf32>, vector<1x8x8xf32> -> vector<4x8x8xf32>
    %67 = arith.truncf %66 : vector<4x8x8xf32> to vector<4x8x8xbf16>
    "tpu.trace_start"() <{level = 10 : i32, message = "hqd,hkd->hqk"}> : () -> ()
    %cst_19 = arith.constant dense<0.000000e+00> : vector<4x8x8xf32>
    %68 = tpu.matmul %47, %57, %cst_19 {dimension_numbers = #tpu.dot_dimension_numbers<[2], [2], [1], [1], [0, 0, 0, 1, 1, 1], [0], [0]>} : vector<4x8x8xbf16>, vector<4x8x8xbf16>, vector<4x8x8xf32> -> vector<4x8x8xf32>
    "tpu.trace_stop"() : () -> ()
    %69 = arith.addf %68, %4 : vector<4x8x8xf32>
    %cst_20 = arith.constant dense<0xFF800000> : vector<4x8xf32>
    %70 = vector.multi_reduction <maximumf>, %69, %cst_20 [2] : vector<4x8x8xf32> to vector<4x8xf32>
    %71 = vector.shape_cast %70 : vector<4x8xf32> to vector<4x8x1xf32>
    %72 = vector.broadcast %71 : vector<4x8x1xf32> to vector<4x8x8xf32>
    %73 = arith.subf %69, %72 : vector<4x8x8xf32>
    %74 = math.exp %73 : vector<4x8x8xf32>
    %cst_21 = arith.constant dense<0.000000e+00> : vector<4x8xf32>
    %75 = vector.multi_reduction <add>, %74, %cst_21 [2] : vector<4x8x8xf32> to vector<4x8xf32>
    %76 = vector.shape_cast %75 : vector<4x8xf32> to vector<4x8x1xf32>
    %77 = tpu.reciprocal %76 {approx = true} : vector<4x8x1xf32> -> vector<4x8x1xf32>
    %78 = vector.broadcast %77 : vector<4x8x1xf32> to vector<4x8x8xf32>
    %79 = arith.mulf %74, %78 : vector<4x8x8xf32>
    %80 = arith.truncf %79 : vector<4x8x8xf32> to vector<4x8x8xbf16>
    "tpu.trace_start"() <{level = 10 : i32, message = "hqk,hkd->hqd"}> : () -> ()
    %cst_22 = arith.constant dense<0.000000e+00> : vector<4x8x8xf32>
    %81 = tpu.matmul %80, %67, %cst_22 {dimension_numbers = #tpu.dot_dimension_numbers<[2], [1], [1], [2], [0, 0, 0, 1, 1, 2], [0], [0]>} : vector<4x8x8xbf16>, vector<4x8x8xbf16>, vector<4x8x8xf32> -> vector<4x8x8xf32>
    "tpu.trace_stop"() : () -> ()
    %82 = arith.truncf %81 : vector<4x8x8xf32> to vector<4x8x8xbf16>
    %c0_23 = arith.constant 0 : index
    %c0_24 = arith.constant 0 : index
    %c0_25 = arith.constant 0 : index
    %c0_26 = arith.constant 0 : index
    %83 = vector.load %arg7[%c0_23, %c0_24, %c0_25, %c0_26] : memref<2x4x8x128xbf16, #tpu.memory_space<vmem>>, vector<1x4x8x128xbf16>
    %84 = vector.shape_cast %83 : vector<1x4x8x128xbf16> to vector<4x8x128xbf16>
    "tpu.trace_start"() <{level = 10 : i32, message = "hsd,hdo->hso"}> : () -> ()
    %cst_27 = arith.constant dense<0.000000e+00> : vector<4x8x128xf32>
    %85 = tpu.matmul %82, %84, %cst_27 {dimension_numbers = #tpu.dot_dimension_numbers<[2], [1], [1], [2], [0, 0, 0, 1, 1, 2], [0], [0]>} : vector<4x8x8xbf16>, vector<4x8x128xbf16>, vector<4x8x128xf32> -> vector<4x8x128xf32>
    "tpu.trace_stop"() : () -> ()
    %cst_28 = arith.constant dense<0.000000e+00> : vector<8x128xf32>
    %86 = vector.multi_reduction <add>, %85, %cst_28 [0] : vector<4x8x128xf32> to vector<8x128xf32>
    %c0_29 = arith.constant 0 : index
    %c0_30 = arith.constant 0 : index
    %c0_31 = arith.constant 0 : index
    %87 = vector.load %arg8[%c0_29, %c0_30, %c0_31] : memref<2x1x128xf32, #tpu.memory_space<vmem>>, vector<1x1x128xf32>
    %88 = vector.shape_cast %87 : vector<1x1x128xf32> to vector<1x128xf32>
    %89 = vector.broadcast %88 : vector<1x128xf32> to vector<8x128xf32>
    %90 = arith.addf %86, %89 : vector<8x128xf32>
    %91 = arith.addf %90, %29 : vector<8x128xf32>
    %c0_32 = arith.constant 0 : index
    %c0_33 = arith.constant 0 : index
    %c0_34 = arith.constant 0 : index
    %92 = vector.load %arg9[%c0_32, %c0_33, %c0_34] : memref<2x1x128xf32, #tpu.memory_space<vmem>>, vector<1x1x128xf32>
    %93 = vector.shape_cast %92 : vector<1x1x128xf32> to vector<1x128xf32>
    %c0_35 = arith.constant 0 : index
    %c0_36 = arith.constant 0 : index
    %c0_37 = arith.constant 0 : index
    %94 = vector.load %arg10[%c0_35, %c0_36, %c0_37] : memref<2x1x128xf32, #tpu.memory_space<vmem>>, vector<1x1x128xf32>
    %95 = vector.shape_cast %94 : vector<1x1x128xf32> to vector<1x128xf32>
    %cst_38 = arith.constant dense<0.000000e+00> : vector<8xf32>
    %96 = vector.multi_reduction <add>, %91, %cst_38 [1] : vector<8x128xf32> to vector<8xf32>
    %97 = vector.shape_cast %96 : vector<8xf32> to vector<8x1xf32>
    %cst_39 = arith.constant 3.125000e-02 : f32
    %98 = vector.broadcast %cst_39 : f32 to vector<8x1xf32>
    %99 = arith.mulf %97, %98 : vector<8x1xf32>
    %100 = arith.mulf %91, %91 : vector<8x128xf32>
    %cst_40 = arith.constant dense<0.000000e+00> : vector<8xf32>
    %101 = vector.multi_reduction <add>, %100, %cst_40 [1] : vector<8x128xf32> to vector<8xf32>
    %102 = vector.shape_cast %101 : vector<8xf32> to vector<8x1xf32>
    %cst_41 = arith.constant 3.125000e-02 : f32
    %103 = vector.broadcast %cst_41 : f32 to vector<8x1xf32>
    %104 = arith.mulf %102, %103 : vector<8x1xf32>
    %105 = arith.mulf %99, %99 : vector<8x1xf32>
    %106 = arith.subf %104, %105 : vector<8x1xf32>
    %107 = vector.broadcast %99 : vector<8x1xf32> to vector<8x128xf32>
    %108 = arith.subf %91, %107 : vector<8x128xf32>
    %cst_42 = arith.constant 9.99999996E-13 : f32
    %109 = vector.broadcast %cst_42 : f32 to vector<8x1xf32>
    %110 = arith.addf %106, %109 : vector<8x1xf32>
    %111 = math.rsqrt %110 : vector<8x1xf32>
    %112 = vector.broadcast %111 : vector<8x1xf32> to vector<8x128xf32>
    %113 = arith.mulf %108, %112 : vector<8x128xf32>
    %114 = vector.broadcast %93 : vector<1x128xf32> to vector<8x128xf32>
    %115 = arith.mulf %113, %114 : vector<8x128xf32>
    %116 = vector.broadcast %95 : vector<1x128xf32> to vector<8x128xf32>
    %117 = arith.addf %115, %116 : vector<8x128xf32>
    %118 = arith.truncf %117 : vector<8x128xf32> to vector<8x128xbf16>
    %c0_43 = arith.constant 0 : index
    %c0_44 = arith.constant 0 : index
    %c0_45 = arith.constant 0 : index
    %119 = vector.load %arg11[%c0_43, %c0_44, %c0_45] : memref<2x128x128xbf16, #tpu.memory_space<vmem>>, vector<1x128x128xbf16>
    %120 = vector.shape_cast %119 : vector<1x128x128xbf16> to vector<128x128xbf16>
    %cst_46 = arith.constant dense<0.000000e+00> : vector<8x128xf32>
    %121 = tpu.matmul %118, %120, %cst_46 {dimension_numbers = #tpu.dot_dimension_numbers<[1], [0], [0], [1], [0, 0, 1, 1], [], []>} : vector<8x128xbf16>, vector<128x128xbf16>, vector<8x128xf32> -> vector<8x128xf32>
    %c0_47 = arith.constant 0 : index
    %c0_48 = arith.constant 0 : index
    %c0_49 = arith.constant 0 : index
    %122 = vector.load %arg12[%c0_47, %c0_48, %c0_49] : memref<2x1x128xf32, #tpu.memory_space<vmem>>, vector<1x1x128xf32>
    %123 = vector.shape_cast %122 : vector<1x1x128xf32> to vector<1x128xf32>
    %124 = vector.broadcast %123 : vector<1x128xf32> to vector<8x128xf32>
    %125 = arith.addf %121, %124 : vector<8x128xf32>
    %cst_50 = arith.constant 5.000000e-01 : f32
    %126 = vector.broadcast %cst_50 : f32 to vector<8x128xf32>
    %127 = arith.mulf %126, %125 : vector<8x128xf32>
    %cst_51 = arith.constant 4.471500e-02 : f32
    %128 = vector.broadcast %cst_51 : f32 to vector<8x128xf32>
    %129 = arith.mulf %128, %125 : vector<8x128xf32>
    %130 = arith.mulf %129, %125 : vector<8x128xf32>
    %131 = arith.mulf %130, %125 : vector<8x128xf32>
    %132 = arith.addf %125, %131 : vector<8x128xf32>
    %cst_52 = arith.constant 0.797884583 : f32
    %133 = vector.broadcast %cst_52 : f32 to vector<8x128xf32>
    %134 = arith.mulf %133, %132 : vector<8x128xf32>
    %135 = math.tanh %134 : vector<8x128xf32>
    %cst_53 = arith.constant 1.000000e+00 : f32
    %136 = vector.broadcast %cst_53 : f32 to vector<8x128xf32>
    %137 = arith.addf %136, %135 : vector<8x128xf32>
    %138 = arith.mulf %127, %137 : vector<8x128xf32>
    %139 = arith.truncf %138 : vector<8x128xf32> to vector<8x128xbf16>
    %c0_54 = arith.constant 0 : index
    %c0_55 = arith.constant 0 : index
    %c0_56 = arith.constant 0 : index
    %140 = vector.load %arg13[%c0_54, %c0_55, %c0_56] : memref<2x128x128xbf16, #tpu.memory_space<vmem>>, vector<1x128x128xbf16>
    %141 = vector.shape_cast %140 : vector<1x128x128xbf16> to vector<128x128xbf16>
    %cst_57 = arith.constant dense<0.000000e+00> : vector<8x128xf32>
    %142 = tpu.matmul %139, %141, %cst_57 {dimension_numbers = #tpu.dot_dimension_numbers<[1], [0], [0], [1], [0, 0, 1, 1], [], []>} : vector<8x128xbf16>, vector<128x128xbf16>, vector<8x128xf32> -> vector<8x128xf32>
    %c0_58 = arith.constant 0 : index
    %c0_59 = arith.constant 0 : index
    %c0_60 = arith.constant 0 : index
    %143 = vector.load %arg14[%c0_58, %c0_59, %c0_60] : memref<2x1x128xf32, #tpu.memory_space<vmem>>, vector<1x1x128xf32>
    %144 = vector.shape_cast %143 : vector<1x1x128xf32> to vector<1x128xf32>
    %145 = vector.broadcast %144 : vector<1x128xf32> to vector<8x128xf32>
    %146 = arith.addf %142, %145 : vector<8x128xf32>
    %147 = arith.addf %146, %117 : vector<8x128xf32>
    %c0_61 = arith.constant 0 : index
    %c0_62 = arith.constant 0 : index
    %c0_63 = arith.constant 0 : index
    %148 = vector.load %arg15[%c0_61, %c0_62, %c0_63] : memref<2x1x128xf32, #tpu.memory_space<vmem>>, vector<1x1x128xf32>
    %149 = vector.shape_cast %148 : vector<1x1x128xf32> to vector<1x128xf32>
    %c0_64 = arith.constant 0 : index
    %c0_65 = arith.constant 0 : index
    %c0_66 = arith.constant 0 : index
    %150 = vector.load %arg16[%c0_64, %c0_65, %c0_66] : memref<2x1x128xf32, #tpu.memory_space<vmem>>, vector<1x1x128xf32>
    %151 = vector.shape_cast %150 : vector<1x1x128xf32> to vector<1x128xf32>
    %cst_67 = arith.constant dense<0.000000e+00> : vector<8xf32>
    %152 = vector.multi_reduction <add>, %147, %cst_67 [1] : vector<8x128xf32> to vector<8xf32>
    %153 = vector.shape_cast %152 : vector<8xf32> to vector<8x1xf32>
    %cst_68 = arith.constant 3.125000e-02 : f32
    %154 = vector.broadcast %cst_68 : f32 to vector<8x1xf32>
    %155 = arith.mulf %153, %154 : vector<8x1xf32>
    %156 = arith.mulf %147, %147 : vector<8x128xf32>
    %cst_69 = arith.constant dense<0.000000e+00> : vector<8xf32>
    %157 = vector.multi_reduction <add>, %156, %cst_69 [1] : vector<8x128xf32> to vector<8xf32>
    %158 = vector.shape_cast %157 : vector<8xf32> to vector<8x1xf32>
    %cst_70 = arith.constant 3.125000e-02 : f32
    %159 = vector.broadcast %cst_70 : f32 to vector<8x1xf32>
    %160 = arith.mulf %158, %159 : vector<8x1xf32>
    %161 = arith.mulf %155, %155 : vector<8x1xf32>
    %162 = arith.subf %160, %161 : vector<8x1xf32>
    %163 = vector.broadcast %155 : vector<8x1xf32> to vector<8x128xf32>
    %164 = arith.subf %147, %163 : vector<8x128xf32>
    %cst_71 = arith.constant 9.99999996E-13 : f32
    %165 = vector.broadcast %cst_71 : f32 to vector<8x1xf32>
    %166 = arith.addf %162, %165 : vector<8x1xf32>
    %167 = math.rsqrt %166 : vector<8x1xf32>
    %168 = vector.broadcast %167 : vector<8x1xf32> to vector<8x128xf32>
    %169 = arith.mulf %164, %168 : vector<8x128xf32>
    %170 = vector.broadcast %149 : vector<1x128xf32> to vector<8x128xf32>
    %171 = arith.mulf %169, %170 : vector<8x128xf32>
    %172 = vector.broadcast %151 : vector<1x128xf32> to vector<8x128xf32>
    %173 = arith.addf %171, %172 : vector<8x128xf32>
    %c0_72 = arith.constant 0 : index
    %c0_73 = arith.constant 0 : index
    %c0_74 = arith.constant 0 : index
    %174 = vector.load %arg17[%c0_72, %c0_73, %c0_74] : memref<2x8x128xf32, #tpu.memory_space<vmem>>, vector<1x8x128xf32>
    %175 = vector.shape_cast %174 : vector<1x8x128xf32> to vector<8x128xf32>
    %176 = vector.shape_cast %173 : vector<8x128xf32> to vector<1x8x128xf32>
    tpu.vector_store %arg17[%c0_72, %c0_73, %c0_74], %176 {strides = array<i32>} : memref<2x8x128xf32, #tpu.memory_space<vmem>>, vector<1x8x128xf32>,
    %177 = arith.truncf %173 : vector<8x128xf32> to vector<8x128xbf16>
    %c1 = arith.constant 1 : index
    %c0_75 = arith.constant 0 : index
    %c0_76 = arith.constant 0 : index
    %178 = vector.load %arg5[%c1, %c0_75, %c0_76] : memref<2x128x384xbf16, #tpu.memory_space<vmem>>, vector<1x128x384xbf16>
    %179 = vector.shape_cast %178 : vector<1x128x384xbf16> to vector<128x384xbf16>
    %cst_77 = arith.constant dense<0.000000e+00> : vector<8x384xf32>
    %180 = tpu.matmul %177, %179, %cst_77 {dimension_numbers = #tpu.dot_dimension_numbers<[1], [0], [0], [1], [0, 0, 1, 1], [], []>} : vector<8x128xbf16>, vector<128x384xbf16>, vector<8x384xf32> -> vector<8x384xf32>
    %c1_78 = arith.constant 1 : index
    %c0_79 = arith.constant 0 : index
    %c0_80 = arith.constant 0 : index
    %181 = vector.load %arg6[%c1_78, %c0_79, %c0_80] : memref<2x1x384xf32, #tpu.memory_space<vmem>>, vector<1x1x384xf32>
    %182 = vector.shape_cast %181 : vector<1x1x384xf32> to vector<1x384xf32>
    %183 = vector.broadcast %182 : vector<1x384xf32> to vector<8x384xf32>
    %184 = arith.addf %180, %183 : vector<8x384xf32>
    %185 = vector.extract_strided_slice %184 {offsets = [0, 0], sizes = [8, 8], strides = [1, 1]} : vector<8x384xf32> to vector<8x8xf32>
    %186 = vector.extract_strided_slice %184 {offsets = [0, 8], sizes = [8, 8], strides = [1, 1]} : vector<8x384xf32> to vector<8x8xf32>
    %187 = vector.extract_strided_slice %184 {offsets = [0, 16], sizes = [8, 8], strides = [1, 1]} : vector<8x384xf32> to vector<8x8xf32>
    %188 = vector.extract_strided_slice %184 {offsets = [0, 24], sizes = [8, 8], strides = [1, 1]} : vector<8x384xf32> to vector<8x8xf32>
    %189 = vector.shape_cast %185 : vector<8x8xf32> to vector<1x8x8xf32>
    %190 = vector.shape_cast %186 : vector<8x8xf32> to vector<1x8x8xf32>
    %191 = vector.shape_cast %187 : vector<8x8xf32> to vector<1x8x8xf32>
    %192 = vector.shape_cast %188 : vector<8x8xf32> to vector<1x8x8xf32>
    %193 = tpu.concatenate %189, %190, %191, %192 in 0 : vector<1x8x8xf32>, vector<1x8x8xf32>, vector<1x8x8xf32>, vector<1x8x8xf32> -> vector<4x8x8xf32>
    %194 = arith.truncf %193 : vector<4x8x8xf32> to vector<4x8x8xbf16>
    %195 = vector.extract_strided_slice %184 {offsets = [0, 128], sizes = [8, 8], strides = [1, 1]} : vector<8x384xf32> to vector<8x8xf32>
    %196 = vector.extract_strided_slice %184 {offsets = [0, 136], sizes = [8, 8], strides = [1, 1]} : vector<8x384xf32> to vector<8x8xf32>
    %197 = vector.extract_strided_slice %184 {offsets = [0, 144], sizes = [8, 8], strides = [1, 1]} : vector<8x384xf32> to vector<8x8xf32>
    %198 = vector.extract_strided_slice %184 {offsets = [0, 152], sizes = [8, 8], strides = [1, 1]} : vector<8x384xf32> to vector<8x8xf32>
    %199 = vector.shape_cast %195 : vector<8x8xf32> to vector<1x8x8xf32>
    %200 = vector.shape_cast %196 : vector<8x8xf32> to vector<1x8x8xf32>
    %201 = vector.shape_cast %197 : vector<8x8xf32> to vector<1x8x8xf32>
    %202 = vector.shape_cast %198 : vector<8x8xf32> to vector<1x8x8xf32>
    %203 = tpu.concatenate %199, %200, %201, %202 in 0 : vector<1x8x8xf32>, vector<1x8x8xf32>, vector<1x8x8xf32>, vector<1x8x8xf32> -> vector<4x8x8xf32>
    %204 = arith.truncf %203 : vector<4x8x8xf32> to vector<4x8x8xbf16>
    %205 = vector.extract_strided_slice %184 {offsets = [0, 256], sizes = [8, 8], strides = [1, 1]} : vector<8x384xf32> to vector<8x8xf32>
    %206 = vector.extract_strided_slice %184 {offsets = [0, 264], sizes = [8, 8], strides = [1, 1]} : vector<8x384xf32> to vector<8x8xf32>
    %207 = vector.extract_strided_slice %184 {offsets = [0, 272], sizes = [8, 8], strides = [1, 1]} : vector<8x384xf32> to vector<8x8xf32>
    %208 = vector.extract_strided_slice %184 {offsets = [0, 280], sizes = [8, 8], strides = [1, 1]} : vector<8x384xf32> to vector<8x8xf32>
    %209 = vector.shape_cast %205 : vector<8x8xf32> to vector<1x8x8xf32>
    %210 = vector.shape_cast %206 : vector<8x8xf32> to vector<1x8x8xf32>
    %211 = vector.shape_cast %207 : vector<8x8xf32> to vector<1x8x8xf32>
    %212 = vector.shape_cast %208 : vector<8x8xf32> to vector<1x8x8xf32>
    %213 = tpu.concatenate %209, %210, %211, %212 in 0 : vector<1x8x8xf32>, vector<1x8x8xf32>, vector<1x8x8xf32>, vector<1x8x8xf32> -> vector<4x8x8xf32>
    %214 = arith.truncf %213 : vector<4x8x8xf32> to vector<4x8x8xbf16>
    "tpu.trace_start"() <{level = 10 : i32, message = "hqd,hkd->hqk"}> : () -> ()
    %cst_81 = arith.constant dense<0.000000e+00> : vector<4x8x8xf32>
    %215 = tpu.matmul %194, %204, %cst_81 {dimension_numbers = #tpu.dot_dimension_numbers<[2], [2], [1], [1], [0, 0, 0, 1, 1, 1], [0], [0]>} : vector<4x8x8xbf16>, vector<4x8x8xbf16>, vector<4x8x8xf32> -> vector<4x8x8xf32>
    "tpu.trace_stop"() : () -> ()
    %216 = arith.addf %215, %4 : vector<4x8x8xf32>
    %cst_82 = arith.constant dense<0xFF800000> : vector<4x8xf32>
    %217 = vector.multi_reduction <maximumf>, %216, %cst_82 [2] : vector<4x8x8xf32> to vector<4x8xf32>
    %218 = vector.shape_cast %217 : vector<4x8xf32> to vector<4x8x1xf32>
    %219 = vector.broadcast %218 : vector<4x8x1xf32> to vector<4x8x8xf32>
    %220 = arith.subf %216, %219 : vector<4x8x8xf32>
    %221 = math.exp %220 : vector<4x8x8xf32>
    %cst_83 = arith.constant dense<0.000000e+00> : vector<4x8xf32>
    %222 = vector.multi_reduction <add>, %221, %cst_83 [2] : vector<4x8x8xf32> to vector<4x8xf32>
    %223 = vector.shape_cast %222 : vector<4x8xf32> to vector<4x8x1xf32>
    %224 = tpu.reciprocal %223 {approx = true} : vector<4x8x1xf32> -> vector<4x8x1xf32>
    %225 = vector.broadcast %224 : vector<4x8x1xf32> to vector<4x8x8xf32>
    %226 = arith.mulf %221, %225 : vector<4x8x8xf32>
    %227 = arith.truncf %226 : vector<4x8x8xf32> to vector<4x8x8xbf16>
    "tpu.trace_start"() <{level = 10 : i32, message = "hqk,hkd->hqd"}> : () -> ()
    %cst_84 = arith.constant dense<0.000000e+00> : vector<4x8x8xf32>
    %228 = tpu.matmul %227, %214, %cst_84 {dimension_numbers = #tpu.dot_dimension_numbers<[2], [1], [1], [2], [0, 0, 0, 1, 1, 2], [0], [0]>} : vector<4x8x8xbf16>, vector<4x8x8xbf16>, vector<4x8x8xf32> -> vector<4x8x8xf32>
    "tpu.trace_stop"() : () -> ()
    %229 = arith.truncf %228 : vector<4x8x8xf32> to vector<4x8x8xbf16>
    %c1_85 = arith.constant 1 : index
    %c0_86 = arith.constant 0 : index
    %c0_87 = arith.constant 0 : index
    %c0_88 = arith.constant 0 : index
    %230 = vector.load %arg7[%c1_85, %c0_86, %c0_87, %c0_88] : memref<2x4x8x128xbf16, #tpu.memory_space<vmem>>, vector<1x4x8x128xbf16>
    %231 = vector.shape_cast %230 : vector<1x4x8x128xbf16> to vector<4x8x128xbf16>
    "tpu.trace_start"() <{level = 10 : i32, message = "hsd,hdo->hso"}> : () -> ()
    %cst_89 = arith.constant dense<0.000000e+00> : vector<4x8x128xf32>
    %232 = tpu.matmul %229, %231, %cst_89 {dimension_numbers = #tpu.dot_dimension_numbers<[2], [1], [1], [2], [0, 0, 0, 1, 1, 2], [0], [0]>} : vector<4x8x8xbf16>, vector<4x8x128xbf16>, vector<4x8x128xf32> -> vector<4x8x128xf32>
    "tpu.trace_stop"() : () -> ()
    %cst_90 = arith.constant dense<0.000000e+00> : vector<8x128xf32>
    %233 = vector.multi_reduction <add>, %232, %cst_90 [0] : vector<4x8x128xf32> to vector<8x128xf32>
    %c1_91 = arith.constant 1 : index
    %c0_92 = arith.constant 0 : index
    %c0_93 = arith.constant 0 : index
    %234 = vector.load %arg8[%c1_91, %c0_92, %c0_93] : memref<2x1x128xf32, #tpu.memory_space<vmem>>, vector<1x1x128xf32>
    %235 = vector.shape_cast %234 : vector<1x1x128xf32> to vector<1x128xf32>
    %236 = vector.broadcast %235 : vector<1x128xf32> to vector<8x128xf32>
    %237 = arith.addf %233, %236 : vector<8x128xf32>
    %238 = arith.addf %237, %173 : vector<8x128xf32>
    %c1_94 = arith.constant 1 : index
    %c0_95 = arith.constant 0 : index
    %c0_96 = arith.constant 0 : index
    %239 = vector.load %arg9[%c1_94, %c0_95, %c0_96] : memref<2x1x128xf32, #tpu.memory_space<vmem>>, vector<1x1x128xf32>
    %240 = vector.shape_cast %239 : vector<1x1x128xf32> to vector<1x128xf32>
    %c1_97 = arith.constant 1 : index
    %c0_98 = arith.constant 0 : index
    %c0_99 = arith.constant 0 : index
    %241 = vector.load %arg10[%c1_97, %c0_98, %c0_99] : memref<2x1x128xf32, #tpu.memory_space<vmem>>, vector<1x1x128xf32>
    %242 = vector.shape_cast %241 : vector<1x1x128xf32> to vector<1x128xf32>
    %cst_100 = arith.constant dense<0.000000e+00> : vector<8xf32>
    %243 = vector.multi_reduction <add>, %238, %cst_100 [1] : vector<8x128xf32> to vector<8xf32>
    %244 = vector.shape_cast %243 : vector<8xf32> to vector<8x1xf32>
    %cst_101 = arith.constant 3.125000e-02 : f32
    %245 = vector.broadcast %cst_101 : f32 to vector<8x1xf32>
    %246 = arith.mulf %244, %245 : vector<8x1xf32>
    %247 = arith.mulf %238, %238 : vector<8x128xf32>
    %cst_102 = arith.constant dense<0.000000e+00> : vector<8xf32>
    %248 = vector.multi_reduction <add>, %247, %cst_102 [1] : vector<8x128xf32> to vector<8xf32>
    %249 = vector.shape_cast %248 : vector<8xf32> to vector<8x1xf32>
    %cst_103 = arith.constant 3.125000e-02 : f32
    %250 = vector.broadcast %cst_103 : f32 to vector<8x1xf32>
    %251 = arith.mulf %249, %250 : vector<8x1xf32>
    %252 = arith.mulf %246, %246 : vector<8x1xf32>
    %253 = arith.subf %251, %252 : vector<8x1xf32>
    %254 = vector.broadcast %246 : vector<8x1xf32> to vector<8x128xf32>
    %255 = arith.subf %238, %254 : vector<8x128xf32>
    %cst_104 = arith.constant 9.99999996E-13 : f32
    %256 = vector.broadcast %cst_104 : f32 to vector<8x1xf32>
    %257 = arith.addf %253, %256 : vector<8x1xf32>
    %258 = math.rsqrt %257 : vector<8x1xf32>
    %259 = vector.broadcast %258 : vector<8x1xf32> to vector<8x128xf32>
    %260 = arith.mulf %255, %259 : vector<8x128xf32>
    %261 = vector.broadcast %240 : vector<1x128xf32> to vector<8x128xf32>
    %262 = arith.mulf %260, %261 : vector<8x128xf32>
    %263 = vector.broadcast %242 : vector<1x128xf32> to vector<8x128xf32>
    %264 = arith.addf %262, %263 : vector<8x128xf32>
    %265 = arith.truncf %264 : vector<8x128xf32> to vector<8x128xbf16>
    %c1_105 = arith.constant 1 : index
    %c0_106 = arith.constant 0 : index
    %c0_107 = arith.constant 0 : index
    %266 = vector.load %arg11[%c1_105, %c0_106, %c0_107] : memref<2x128x128xbf16, #tpu.memory_space<vmem>>, vector<1x128x128xbf16>
    %267 = vector.shape_cast %266 : vector<1x128x128xbf16> to vector<128x128xbf16>
    %cst_108 = arith.constant dense<0.000000e+00> : vector<8x128xf32>
    %268 = tpu.matmul %265, %267, %cst_108 {dimension_numbers = #tpu.dot_dimension_numbers<[1], [0], [0], [1], [0, 0, 1, 1], [], []>} : vector<8x128xbf16>, vector<128x128xbf16>, vector<8x128xf32> -> vector<8x128xf32>
    %c1_109 = arith.constant 1 : index
    %c0_110 = arith.constant 0 : index
    %c0_111 = arith.constant 0 : index
    %269 = vector.load %arg12[%c1_109, %c0_110, %c0_111] : memref<2x1x128xf32, #tpu.memory_space<vmem>>, vector<1x1x128xf32>
    %270 = vector.shape_cast %269 : vector<1x1x128xf32> to vector<1x128xf32>
    %271 = vector.broadcast %270 : vector<1x128xf32> to vector<8x128xf32>
    %272 = arith.addf %268, %271 : vector<8x128xf32>
    %cst_112 = arith.constant 5.000000e-01 : f32
    %273 = vector.broadcast %cst_112 : f32 to vector<8x128xf32>
    %274 = arith.mulf %273, %272 : vector<8x128xf32>
    %cst_113 = arith.constant 4.471500e-02 : f32
    %275 = vector.broadcast %cst_113 : f32 to vector<8x128xf32>
    %276 = arith.mulf %275, %272 : vector<8x128xf32>
    %277 = arith.mulf %276, %272 : vector<8x128xf32>
    %278 = arith.mulf %277, %272 : vector<8x128xf32>
    %279 = arith.addf %272, %278 : vector<8x128xf32>
    %cst_114 = arith.constant 0.797884583 : f32
    %280 = vector.broadcast %cst_114 : f32 to vector<8x128xf32>
    %281 = arith.mulf %280, %279 : vector<8x128xf32>
    %282 = math.tanh %281 : vector<8x128xf32>
    %cst_115 = arith.constant 1.000000e+00 : f32
    %283 = vector.broadcast %cst_115 : f32 to vector<8x128xf32>
    %284 = arith.addf %283, %282 : vector<8x128xf32>
    %285 = arith.mulf %274, %284 : vector<8x128xf32>
    %286 = arith.truncf %285 : vector<8x128xf32> to vector<8x128xbf16>
    %c1_116 = arith.constant 1 : index
    %c0_117 = arith.constant 0 : index
    %c0_118 = arith.constant 0 : index
    %287 = vector.load %arg13[%c1_116, %c0_117, %c0_118] : memref<2x128x128xbf16, #tpu.memory_space<vmem>>, vector<1x128x128xbf16>
    %288 = vector.shape_cast %287 : vector<1x128x128xbf16> to vector<128x128xbf16>
    %cst_119 = arith.constant dense<0.000000e+00> : vector<8x128xf32>
    %289 = tpu.matmul %286, %288, %cst_119 {dimension_numbers = #tpu.dot_dimension_numbers<[1], [0], [0], [1], [0, 0, 1, 1], [], []>} : vector<8x128xbf16>, vector<128x128xbf16>, vector<8x128xf32> -> vector<8x128xf32>
    %c1_120 = arith.constant 1 : index
    %c0_121 = arith.constant 0 : index
    %c0_122 = arith.constant 0 : index
    %290 = vector.load %arg14[%c1_120, %c0_121, %c0_122] : memref<2x1x128xf32, #tpu.memory_space<vmem>>, vector<1x1x128xf32>
    %291 = vector.shape_cast %290 : vector<1x1x128xf32> to vector<1x128xf32>
    %292 = vector.broadcast %291 : vector<1x128xf32> to vector<8x128xf32>
    %293 = arith.addf %289, %292 : vector<8x128xf32>
    %294 = arith.addf %293, %264 : vector<8x128xf32>
    %c1_123 = arith.constant 1 : index
    %c0_124 = arith.constant 0 : index
    %c0_125 = arith.constant 0 : index
    %295 = vector.load %arg15[%c1_123, %c0_124, %c0_125] : memref<2x1x128xf32, #tpu.memory_space<vmem>>, vector<1x1x128xf32>
    %296 = vector.shape_cast %295 : vector<1x1x128xf32> to vector<1x128xf32>
    %c1_126 = arith.constant 1 : index
    %c0_127 = arith.constant 0 : index
    %c0_128 = arith.constant 0 : index
    %297 = vector.load %arg16[%c1_126, %c0_127, %c0_128] : memref<2x1x128xf32, #tpu.memory_space<vmem>>, vector<1x1x128xf32>
    %298 = vector.shape_cast %297 : vector<1x1x128xf32> to vector<1x128xf32>
    %cst_129 = arith.constant dense<0.000000e+00> : vector<8xf32>
    %299 = vector.multi_reduction <add>, %294, %cst_129 [1] : vector<8x128xf32> to vector<8xf32>
    %300 = vector.shape_cast %299 : vector<8xf32> to vector<8x1xf32>
    %cst_130 = arith.constant 3.125000e-02 : f32
    %301 = vector.broadcast %cst_130 : f32 to vector<8x1xf32>
    %302 = arith.mulf %300, %301 : vector<8x1xf32>
    %303 = arith.mulf %294, %294 : vector<8x128xf32>
    %cst_131 = arith.constant dense<0.000000e+00> : vector<8xf32>
    %304 = vector.multi_reduction <add>, %303, %cst_131 [1] : vector<8x128xf32> to vector<8xf32>
    %305 = vector.shape_cast %304 : vector<8xf32> to vector<8x1xf32>
    %cst_132 = arith.constant 3.125000e-02 : f32
    %306 = vector.broadcast %cst_132 : f32 to vector<8x1xf32>
    %307 = arith.mulf %305, %306 : vector<8x1xf32>
    %308 = arith.mulf %302, %302 : vector<8x1xf32>
    %309 = arith.subf %307, %308 : vector<8x1xf32>
    %310 = vector.broadcast %302 : vector<8x1xf32> to vector<8x128xf32>
    %311 = arith.subf %294, %310 : vector<8x128xf32>
    %cst_133 = arith.constant 9.99999996E-13 : f32
    %312 = vector.broadcast %cst_133 : f32 to vector<8x1xf32>
    %313 = arith.addf %309, %312 : vector<8x1xf32>
    %314 = math.rsqrt %313 : vector<8x1xf32>
    %315 = vector.broadcast %314 : vector<8x1xf32> to vector<8x128xf32>
    %316 = arith.mulf %311, %315 : vector<8x128xf32>
    %317 = vector.broadcast %296 : vector<1x128xf32> to vector<8x128xf32>
    %318 = arith.mulf %316, %317 : vector<8x128xf32>
    %319 = vector.broadcast %298 : vector<1x128xf32> to vector<8x128xf32>
    %320 = arith.addf %318, %319 : vector<8x128xf32>
    %c1_134 = arith.constant 1 : index
    %c0_135 = arith.constant 0 : index
    %c0_136 = arith.constant 0 : index
    %321 = vector.load %arg17[%c1_134, %c0_135, %c0_136] : memref<2x8x128xf32, #tpu.memory_space<vmem>>, vector<1x8x128xf32>
    %322 = vector.shape_cast %321 : vector<1x8x128xf32> to vector<8x128xf32>
    %323 = vector.shape_cast %320 : vector<8x128xf32> to vector<1x8x128xf32>
    tpu.vector_store %arg17[%c1_134, %c0_135, %c0_136], %323 {strides = array<i32>} : memref<2x8x128xf32, #tpu.memory_space<vmem>>, vector<1x8x128xf32>,
    return
  }
  func.func @transform_0(%arg0: i32) -> (i32, i32) {
    %c0_i32 = arith.constant 0 : i32
    %c0_i32_0 = arith.constant 0 : i32
    return %arg0, %c0_i32 : i32, i32
  }
  func.func @transform_1(%arg0: i32) -> (i32, i32, i32) {
    %c0_i32 = arith.constant 0 : i32
    %c0_i32_0 = arith.constant 0 : i32
    %c0_i32_1 = arith.constant 0 : i32
    return %arg0, %c0_i32, %c0_i32_0 : i32, i32, i32
  }
  func.func @transform_2(%arg0: i32) -> (i32, i32) {
    %c0_i32 = arith.constant 0 : i32
    %c0_i32_0 = arith.constant 0 : i32
    %c0_i32_1 = arith.constant 0 : i32
    return %c0_i32, %c0_i32_0 : i32, i32
  }
  func.func @transform_3(%arg0: i32) -> (i32, i32) {
    %c0_i32 = arith.constant 0 : i32
    %c0_i32_0 = arith.constant 0 : i32
    %c0_i32_1 = arith.constant 0 : i32
    return %c0_i32, %c0_i32_0 : i32, i32
  }
  func.func @transform_4(%arg0: i32) -> (i32, i32, i32) {
    %c0_i32 = arith.constant 0 : i32
    %c0_i32_0 = arith.constant 0 : i32
    %c0_i32_1 = arith.constant 0 : i32
    %c0_i32_2 = arith.constant 0 : i32
    return %c0_i32, %c0_i32_0, %c0_i32_1 : i32, i32, i32
  }
  func.func @transform_5(%arg0: i32) -> (i32, i32, i32) {
    %c0_i32 = arith.constant 0 : i32
    %c0_i32_0 = arith.constant 0 : i32
    %c0_i32_1 = arith.constant 0 : i32
    %c0_i32_2 = arith.constant 0 : i32
    return %c0_i32, %c0_i32_0, %c0_i32_1 : i32, i32, i32
  }
  func.func @transform_6(%arg0: i32) -> (i32, i32, i32, i32) {
    %c0_i32 = arith.constant 0 : i32
    %c0_i32_0 = arith.constant 0 : i32
    %c0_i32_1 = arith.constant 0 : i32
    %c0_i32_2 = arith.constant 0 : i32
    %c0_i32_3 = arith.constant 0 : i32
    return %c0_i32, %c0_i32_0, %c0_i32_1, %c0_i32_2 : i32, i32, i32, i32
  }
  func.func @transform_7(%arg0: i32) -> (i32, i32, i32) {
    %c0_i32 = arith.constant 0 : i32
    %c0_i32_0 = arith.constant 0 : i32
    %c0_i32_1 = arith.constant 0 : i32
    %c0_i32_2 = arith.constant 0 : i32
    return %c0_i32, %c0_i32_0, %c0_i32_1 : i32, i32, i32
  }
  func.func @transform_8(%arg0: i32) -> (i32, i32, i32) {
    %c0_i32 = arith.constant 0 : i32
    %c0_i32_0 = arith.constant 0 : i32
    %c0_i32_1 = arith.constant 0 : i32
    %c0_i32_2 = arith.constant 0 : i32
    return %c0_i32, %c0_i32_0, %c0_i32_1 : i32, i32, i32
  }
  func.func @transform_9(%arg0: i32) -> (i32, i32, i32) {
    %c0_i32 = arith.constant 0 : i32
    %c0_i32_0 = arith.constant 0 : i32
    %c0_i32_1 = arith.constant 0 : i32
    %c0_i32_2 = arith.constant 0 : i32
    return %c0_i32, %c0_i32_0, %c0_i32_1 : i32, i32, i32
  }
  func.func @transform_10(%arg0: i32) -> (i32, i32, i32) {
    %c0_i32 = arith.constant 0 : i32
    %c0_i32_0 = arith.constant 0 : i32
    %c0_i32_1 = arith.constant 0 : i32
    %c0_i32_2 = arith.constant 0 : i32
    return %c0_i32, %c0_i32_0, %c0_i32_1 : i32, i32, i32
  }
  func.func @transform_11(%arg0: i32) -> (i32, i32, i32) {
    %c0_i32 = arith.constant 0 : i32
    %c0_i32_0 = arith.constant 0 : i32
    %c0_i32_1 = arith.constant 0 : i32
    %c0_i32_2 = arith.constant 0 : i32
    return %c0_i32, %c0_i32_0, %c0_i32_1 : i32, i32, i32
  }
  func.func @transform_12(%arg0: i32) -> (i32, i32, i32) {
    %c0_i32 = arith.constant 0 : i32
    %c0_i32_0 = arith.constant 0 : i32
    %c0_i32_1 = arith.constant 0 : i32
    %c0_i32_2 = arith.constant 0 : i32
    return %c0_i32, %c0_i32_0, %c0_i32_1 : i32, i32, i32
  }
  func.func @transform_13(%arg0: i32) -> (i32, i32, i32) {
    %c0_i32 = arith.constant 0 : i32
    %c0_i32_0 = arith.constant 0 : i32
    %c0_i32_1 = arith.constant 0 : i32
    %c0_i32_2 = arith.constant 0 : i32
    return %c0_i32, %c0_i32_0, %c0_i32_1 : i32, i32, i32
  }
  func.func @transform_14(%arg0: i32) -> (i32, i32, i32) {
    %c0_i32 = arith.constant 0 : i32
    %c0_i32_0 = arith.constant 0 : i32
    %c0_i32_1 = arith.constant 0 : i32
    %c0_i32_2 = arith.constant 0 : i32
    return %c0_i32, %c0_i32_0, %c0_i32_1 : i32, i32, i32
  }
  func.func @transform_15(%arg0: i32) -> (i32, i32, i32) {
    %c0_i32 = arith.constant 0 : i32
    %c0_i32_0 = arith.constant 0 : i32
    %c0_i32_1 = arith.constant 0 : i32
    %c0_i32_2 = arith.constant 0 : i32
    return %c0_i32, %c0_i32_0, %c0_i32_1 : i32, i32, i32
  }
  func.func @transform_16(%arg0: i32) -> (i32, i32, i32) {
    %c0_i32 = arith.constant 0 : i32
    %c0_i32_0 = arith.constant 0 : i32
    %c0_i32_1 = arith.constant 0 : i32
    return %c0_i32, %arg0, %c0_i32_0 : i32, i32, i32
  }
}

</mosaic_0001>

<llo_original>
// kernel: tpu_custom_call.1
$region0: #{tpu_custom_call.1}
  #allocation0 [shape = 'u32[]', space=smem, size = 0x4, offset = 0x4, fixed_abs, tag = 'smem constant byte address 0x4 - core index']
  #allocation1 [shape = 'u32[72,128]{1,0:T(1,128)}', space=vmem, size = 0x9000, scoped, tag = 'internal scratch']
  %s0 = inlined_call_operand.hbm [shape: f32[16,128], index: 0, kind: input, shape index: {}]
  %s1 = inlined_call_operand.hbm [shape: f32[2,8,128], index: 1, kind: input, shape index: {}]
  %s2 = inlined_call_operand.hbm [shape: f32[1,128], index: 2, kind: input, shape index: {}]
  %s3 = inlined_call_operand.hbm [shape: f32[1,128], index: 3, kind: input, shape index: {}]
  %s4 = inlined_call_operand.hbm [shape: bf16[2,128,384], index: 4, kind: input, shape index: {}]
  %s5 = inlined_call_operand.hbm [shape: f32[2,1,384], index: 5, kind: input, shape index: {}]
  %s6 = inlined_call_operand.hbm [shape: bf16[2,4,8,128], index: 6, kind: input, shape index: {}]
  %s7 = inlined_call_operand.vmem [shape: f32[2,1,128], index: 7, kind: input, shape index: {}]
  %s8 = inlined_call_operand.vmem [shape: f32[2,1,128], index: 8, kind: input, shape index: {}]
  %s9 = inlined_call_operand.vmem [shape: f32[2,1,128], index: 9, kind: input, shape index: {}]
  %s10 = inlined_call_operand.hbm [shape: bf16[2,128,128], index: 10, kind: input, shape index: {}]
  %s11 = inlined_call_operand.vmem [shape: f32[2,1,128], index: 11, kind: input, shape index: {}]
  %s12 = inlined_call_operand.hbm [shape: bf16[2,128,128], index: 12, kind: input, shape index: {}]
  %s13 = inlined_call_operand.vmem [shape: f32[2,1,128], index: 13, kind: input, shape index: {}]
  %s14 = inlined_call_operand.vmem [shape: f32[2,1,128], index: 14, kind: input, shape index: {}]
  %s15 = inlined_call_operand.vmem [shape: f32[2,1,128], index: 15, kind: input, shape index: {}]
  %s16 = inlined_call_operand.hbm [shape: f32[2,16,128], index: 16, kind: output, shape index: {}]
  %s17 = sld [smem:[#allocation0]]
  $region133: #{tpu_custom_call.1} parent=0
    _
  %s19 = ssub.s32 1, %s17
  %s20 = scalar_select 0, %s19, %s17
  $region1: #{tpu_custom_call.1} parent=0
    #allocation2 [shape = 'u8[8192]{0}', space=vmem, size = 0x2000, scoped, tag = 'input window, operand 0']
    #allocation3 [shape = 's32[2]{0}', space=sflag, size = 0x8, scoped, tag = 'scoped memory for tpu_custom_call.1']
    #allocation4 [shape = 's32[2]{0}', space=sflag, size = 0x8, scoped, tag = 'scoped memory for tpu_custom_call.1']
    #allocation5 [shape = 'u8[8192]{0}', space=vmem, size = 0x2000, scoped, tag = 'input window, operand 1']
    #allocation6 [shape = 's32[2]{0}', space=sflag, size = 0x8, scoped, tag = 'scoped memory for tpu_custom_call.1']
    #allocation7 [shape = 'u8[512]{0}', space=vmem, size = 0x400, scoped, tag = 'input window, operand 2, single buffered']
    #allocation8 [shape = 'u8[512]{0}', space=vmem, size = 0x400, scoped, tag = 'input window, operand 3, single buffered']
    #allocation9 [shape = 's32[1]{0}', space=sflag, size = 0x4, scoped, tag = 'scoped memory for tpu_custom_call.1']
    #allocation10 [shape = 'u8[196608]{0}', space=vmem, size = 0x30000, scoped, tag = 'input window, operand 4, single buffered']
    #allocation11 [shape = 'u8[3072]{0}', space=vmem, size = 0xc00, scoped, tag = 'input window, operand 5, single buffered']
    #allocation12 [shape = 's32[1]{0}', space=sflag, size = 0x4, scoped, tag = 'scoped memory for tpu_custom_call.1']
    #allocation13 [shape = 'u8[16384]{0}', space=vmem, size = 0x4000, scoped, tag = 'input window, operand 6, single buffered']
    #allocation14 [shape = 'u8[65536]{0}', space=vmem, size = 0x10000, scoped, tag = 'input window, operand 10, single buffered']
    #allocation15 [shape = 's32[1]{0}', space=sflag, size = 0x4, scoped, tag = 'scoped memory for tpu_custom_call.1']
    #allocation16 [shape = 'u8[65536]{0}', space=vmem, size = 0x10000, scoped, tag = 'input window, operand 12, single buffered']
    #allocation17 [shape = 'u8[16384]{0}', space=vmem, size = 0x4000, scoped, tag = 'output window, operand 0']
    %21 = vsyncpa [#allocation3], 0
    %s22 = scalar_lea.sflag [#allocation3], 1
    %23 = vsyncpa %s22, 0
    %24 = vsyncpa [#allocation6], 0
    %s25 = scalar_lea.sflag [#allocation6], 1
    %26 = vsyncpa %s25, 0
    %27 = vsyncpa [#allocation9], 0
    %28 = vsyncpa [#allocation12], 0
    %29 = vsyncpa [#allocation15], 0
    %30 = vsyncpa [#allocation4], 0
    %s31 = scalar_lea.sflag [#allocation4], 1
    %32 = vsyncpa %s31, 0
    loop: start=0, step=1, limit=4
    $region2: #{tpu_custom_call.1} parent=1 // loop_pre_header
      _
    $region3: #{tpu_custom_call.1} parent=1 // loop_header
      %s34 = sphi 0, %s38
      %p35 = scmp.ge.s32.totalorder %s34, 4
      %s44 = sphi 0, %s46
      %s47 = sphi 0, %s44
      %s48 = sphi 0, %s47
      %s64 = sphi 0, %s48
      %s70 = sphi 0, %s72
      %s73 = sphi 0, %s70
      %s74 = sphi 0, %s73
      %s90 = sphi 0, %s74
      %s94 = sphi 0, %s94
      %s96 = sphi 0, %s94
      %s97 = sphi 0, %s96
      %s111 = sphi 0, %s97
      %s115 = sphi 0, %s115
      %s117 = sphi 0, %s115
      %s118 = sphi 0, %s117
      %s132 = sphi 0, %s118
      %s136 = sphi 0, %s136
      %s138 = sphi 0, %s136
      %s139 = sphi 0, %s138
      %s153 = sphi 0, %s139
      %s157 = sphi 0, %s157
      %s159 = sphi 0, %s157
      %s160 = sphi 0, %s159
      %s174 = sphi 0, %s160
      %s178 = sphi 0, %s178
      %s180 = sphi 0, %s178
      %s181 = sphi 0, %s180
      %s195 = sphi 0, %s181
      %s199 = sphi 0, %s199
      %s201 = sphi 0, %s199
      %s202 = sphi 0, %s201
      %s216 = sphi 0, %s202
      %s220 = sphi 0, %s220
      %s222 = sphi 0, %s220
      %s223 = sphi 0, %s222
      %s237 = sphi 0, %s223
      %s241 = sphi 0, %s241
      %s243 = sphi 0, %s241
      %s244 = sphi 0, %s243
      %s258 = sphi 0, %s244
      %s262 = sphi 0, %s262
      %s264 = sphi 0, %s262
      %s265 = sphi 0, %s264
      %s279 = sphi 0, %s265
      %s283 = sphi 0, %s283
      %s285 = sphi 0, %s283
      %s286 = sphi 0, %s285
      %s300 = sphi 0, %s286
      %s304 = sphi 0, %s304
      %s306 = sphi 0, %s304
      %s307 = sphi 0, %s306
      %s321 = sphi 0, %s307
      %s325 = sphi 0, %s325
      %s327 = sphi 0, %s325
      %s328 = sphi 0, %s327
      %s342 = sphi 0, %s328
      %s346 = sphi 0, %s346
      %s348 = sphi 0, %s346
      %s349 = sphi 0, %s348
      %s363 = sphi 0, %s349
      %s367 = sphi 0, %s367
      %s369 = sphi 0, %s367
      %s370 = sphi 0, %s369
      %s384 = sphi 0, %s370
      %s390 = sphi 0, %s392
      %s393 = sphi 0, %s390
      %s394 = sphi 0, %s393
      %s410 = sphi 0, %s394
    $region4: #{tpu_custom_call.1} parent=1 // loop_header_branch
      %37 = sbr.rel (%p35) target = $region8
    $region5: #{tpu_custom_call.1} parent=1 // loop_body
      %s39 = ssub.s32 %s34, 1
      %s40 = ssub.s32 %s34, 2
      %s41 = sadd.s32 %s34, 1
      %s42 = ssub.s32 %s34, %s41
      %p43 = scmp.eq.s32.totalorder %s42, 0
      %s45 = sadd.s32 %s44, 1
      %s46 = scalar_select %p43, %s44, %s45
      %p49 = pneg %p43
      %p50 = scmp.eq.s32.totalorder %s34, 1
      %p51 = por %p49, %p50
      %p52 = scmp.ne.s32.totalorder %s44, %s47
      %p53 = scmp.eq.s32.totalorder %s34, 0
      %p54 = por %p52, %p53
      %p55 = scmp.ne.s32.totalorder %s44, %s47
      %p56 = scmp.eq.s32.totalorder %s39, 1
      %p57 = por %p55, %p56
      %p58 = scmp.ne.s32.totalorder %s47, %s48
      %p59 = scmp.eq.s32.totalorder %s39, 0
      %p60 = por %p58, %p59
      %p61 = scmp.ne.s32.totalorder %s47, %s48
      %p62 = scmp.eq.s32.totalorder %s40, 1
      %p63 = por %p61, %p62
      %p65 = scmp.ne.s32.totalorder %s48, %s64
      %p66 = scmp.eq.s32.totalorder %s40, 0
      %p67 = por %p65, %p66
      %s68 = ssub.s32 %s34, %s41
      %p69 = scmp.eq.s32.totalorder %s68, 0
      %s71 = sadd.s32 %s70, 1
      %s72 = scalar_select %p69, %s70, %s71
      %p75 = pneg %p69
      %p76 = scmp.eq.s32.totalorder %s34, 1
      %p77 = por %p75, %p76
      %p78 = scmp.ne.s32.totalorder %s70, %s73
      %p79 = scmp.eq.s32.totalorder %s34, 0
      %p80 = por %p78, %p79
      %p81 = scmp.ne.s32.totalorder %s70, %s73
      %p82 = scmp.eq.s32.totalorder %s39, 1
      %p83 = por %p81, %p82
      %p84 = scmp.ne.s32.totalorder %s73, %s74
      %p85 = scmp.eq.s32.totalorder %s39, 0
      %p86 = por %p84, %p85
      %p87 = scmp.ne.s32.totalorder %s73, %s74
      %p88 = scmp.eq.s32.totalorder %s40, 1
      %p89 = por %p87, %p88
      %p91 = scmp.ne.s32.totalorder %s74, %s90
      %p92 = scmp.eq.s32.totalorder %s40, 0
      %p93 = por %p91, %p92
      %s95 = sadd.s32 %s94, 1
      %p98 = scmp.eq.s32.totalorder %s34, 1
      %p99 = scmp.ne.s32.totalorder %s94, %s96
      %p100 = scmp.eq.s32.totalorder %s34, 0
      %p101 = por %p99, %p100
      %p102 = scmp.ne.s32.totalorder %s94, %s96
      %p103 = scmp.eq.s32.totalorder %s39, 1
      %p104 = por %p102, %p103
      %p105 = scmp.ne.s32.totalorder %s96, %s97
      %p106 = scmp.eq.s32.totalorder %s39, 0
      %p107 = por %p105, %p106
      %p108 = scmp.ne.s32.totalorder %s96, %s97
      %p109 = scmp.eq.s32.totalorder %s40, 1
      %p110 = por %p108, %p109
      %p112 = scmp.ne.s32.totalorder %s97, %s111
      %p113 = scmp.eq.s32.totalorder %s40, 0
      %p114 = por %p112, %p113
      %s116 = sadd.s32 %s115, 1
      %p119 = scmp.eq.s32.totalorder %s34, 1
      %p120 = scmp.ne.s32.totalorder %s115, %s117
      %p121 = scmp.eq.s32.totalorder %s34, 0
      %p122 = por %p120, %p121
      %p123 = scmp.ne.s32.totalorder %s115, %s117
      %p124 = scmp.eq.s32.totalorder %s39, 1
      %p125 = por %p123, %p124
      %p126 = scmp.ne.s32.totalorder %s117, %s118
      %p127 = scmp.eq.s32.totalorder %s39, 0
      %p128 = por %p126, %p127
      %p129 = scmp.ne.s32.totalorder %s117, %s118
      %p130 = scmp.eq.s32.totalorder %s40, 1
      %p131 = por %p129, %p130
      %p133 = scmp.ne.s32.totalorder %s118, %s132
      %p134 = scmp.eq.s32.totalorder %s40, 0
      %p135 = por %p133, %p134
      %s137 = sadd.s32 %s136, 1
      %p140 = scmp.eq.s32.totalorder %s34, 1
      %p141 = scmp.ne.s32.totalorder %s136, %s138
      %p142 = scmp.eq.s32.totalorder %s34, 0
      %p143 = por %p141, %p142
      %p144 = scmp.ne.s32.totalorder %s136, %s138
      %p145 = scmp.eq.s32.totalorder %s39, 1
      %p146 = por %p144, %p145
      %p147 = scmp.ne.s32.totalorder %s138, %s139
      %p148 = scmp.eq.s32.totalorder %s39, 0
      %p149 = por %p147, %p148
      %p150 = scmp.ne.s32.totalorder %s138, %s139
      %p151 = scmp.eq.s32.totalorder %s40, 1
      %p152 = por %p150, %p151
      %p154 = scmp.ne.s32.totalorder %s139, %s153
      %p155 = scmp.eq.s32.totalorder %s40, 0
      %p156 = por %p154, %p155
      %s158 = sadd.s32 %s157, 1
      %p161 = scmp.eq.s32.totalorder %s34, 1
      %p162 = scmp.ne.s32.totalorder %s157, %s159
      %p163 = scmp.eq.s32.totalorder %s34, 0
      %p164 = por %p162, %p163
      %p165 = scmp.ne.s32.totalorder %s157, %s159
      %p166 = scmp.eq.s32.totalorder %s39, 1
      %p167 = por %p165, %p166
      %p168 = scmp.ne.s32.totalorder %s159, %s160
      %p169 = scmp.eq.s32.totalorder %s39, 0
      %p170 = por %p168, %p169
      %p171 = scmp.ne.s32.totalorder %s159, %s160
      %p172 = scmp.eq.s32.totalorder %s40, 1
      %p173 = por %p171, %p172
      %p175 = scmp.ne.s32.totalorder %s160, %s174
      %p176 = scmp.eq.s32.totalorder %s40, 0
      %p177 = por %p175, %p176
      %s179 = sadd.s32 %s178, 1
      %p182 = scmp.eq.s32.totalorder %s34, 1
      %p183 = scmp.ne.s32.totalorder %s178, %s180
      %p184 = scmp.eq.s32.totalorder %s34, 0
      %p185 = por %p183, %p184
      %p186 = scmp.ne.s32.totalorder %s178, %s180
      %p187 = scmp.eq.s32.totalorder %s39, 1
      %p188 = por %p186, %p187
      %p189 = scmp.ne.s32.totalorder %s180, %s181
      %p190 = scmp.eq.s32.totalorder %s39, 0
      %p191 = por %p189, %p190
      %p192 = scmp.ne.s32.totalorder %s180, %s181
      %p193 = scmp.eq.s32.totalorder %s40, 1
      %p194 = por %p192, %p193
      %p196 = scmp.ne.s32.totalorder %s181, %s195
      %p197 = scmp.eq.s32.totalorder %s40, 0
      %p198 = por %p196, %p197
      %s200 = sadd.s32 %s199, 1
      %p203 = scmp.eq.s32.totalorder %s34, 1
      %p204 = scmp.ne.s32.totalorder %s199, %s201
      %p205 = scmp.eq.s32.totalorder %s34, 0
      %p206 = por %p204, %p205
      %p207 = scmp.ne.s32.totalorder %s199, %s201
      %p208 = scmp.eq.s32.totalorder %s39, 1
      %p209 = por %p207, %p208
      %p210 = scmp.ne.s32.totalorder %s201, %s202
      %p211 = scmp.eq.s32.totalorder %s39, 0
      %p212 = por %p210, %p211
      %p213 = scmp.ne.s32.totalorder %s201, %s202
      %p214 = scmp.eq.s32.totalorder %s40, 1
      %p215 = por %p213, %p214
      %p217 = scmp.ne.s32.totalorder %s202, %s216
      %p218 = scmp.eq.s32.totalorder %s40, 0
      %p219 = por %p217, %p218
      %s221 = sadd.s32 %s220, 1
      %p224 = scmp.eq.s32.totalorder %s34, 1
      %p225 = scmp.ne.s32.totalorder %s220, %s222
      %p226 = scmp.eq.s32.totalorder %s34, 0
      %p227 = por %p225, %p226
      %p228 = scmp.ne.s32.totalorder %s220, %s222
      %p229 = scmp.eq.s32.totalorder %s39, 1
      %p230 = por %p228, %p229
      %p231 = scmp.ne.s32.totalorder %s222, %s223
      %p232 = scmp.eq.s32.totalorder %s39, 0
      %p233 = por %p231, %p232
      %p234 = scmp.ne.s32.totalorder %s222, %s223
      %p235 = scmp.eq.s32.totalorder %s40, 1
      %p236 = por %p234, %p235
      %p238 = scmp.ne.s32.totalorder %s223, %s237
      %p239 = scmp.eq.s32.totalorder %s40, 0
      %p240 = por %p238, %p239
      %s242 = sadd.s32 %s241, 1
      %p245 = scmp.eq.s32.totalorder %s34, 1
      %p246 = scmp.ne.s32.totalorder %s241, %s243
      %p247 = scmp.eq.s32.totalorder %s34, 0
      %p248 = por %p246, %p247
      %p249 = scmp.ne.s32.totalorder %s241, %s243
      %p250 = scmp.eq.s32.totalorder %s39, 1
      %p251 = por %p249, %p250
      %p252 = scmp.ne.s32.totalorder %s243, %s244
      %p253 = scmp.eq.s32.totalorder %s39, 0
      %p254 = por %p252, %p253
      %p255 = scmp.ne.s32.totalorder %s243, %s244
      %p256 = scmp.eq.s32.totalorder %s40, 1
      %p257 = por %p255, %p256
      %p259 = scmp.ne.s32.totalorder %s244, %s258
      %p260 = scmp.eq.s32.totalorder %s40, 0
      %p261 = por %p259, %p260
      %s263 = sadd.s32 %s262, 1
      %p266 = scmp.eq.s32.totalorder %s34, 1
      %p267 = scmp.ne.s32.totalorder %s262, %s264
      %p268 = scmp.eq.s32.totalorder %s34, 0
      %p269 = por %p267, %p268
      %p270 = scmp.ne.s32.totalorder %s262, %s264
      %p271 = scmp.eq.s32.totalorder %s39, 1
      %p272 = por %p270, %p271
      %p273 = scmp.ne.s32.totalorder %s264, %s265
      %p274 = scmp.eq.s32.totalorder %s39, 0
      %p275 = por %p273, %p274
      %p276 = scmp.ne.s32.totalorder %s264, %s265
      %p277 = scmp.eq.s32.totalorder %s40, 1
      %p278 = por %p276, %p277
      %p280 = scmp.ne.s32.totalorder %s265, %s279
      %p281 = scmp.eq.s32.totalorder %s40, 0
      %p282 = por %p280, %p281
      %s284 = sadd.s32 %s283, 1
      %p287 = scmp.eq.s32.totalorder %s34, 1
      %p288 = scmp.ne.s32.totalorder %s283, %s285
      %p289 = scmp.eq.s32.totalorder %s34, 0
      %p290 = por %p288, %p289
      %p291 = scmp.ne.s32.totalorder %s283, %s285
      %p292 = scmp.eq.s32.totalorder %s39, 1
      %p293 = por %p291, %p292
      %p294 = scmp.ne.s32.totalorder %s285, %s286
      %p295 = scmp.eq.s32.totalorder %s39, 0
      %p296 = por %p294, %p295
      %p297 = scmp.ne.s32.totalorder %s285, %s286
      %p298 = scmp.eq.s32.totalorder %s40, 1
      %p299 = por %p297, %p298
      %p301 = scmp.ne.s32.totalorder %s286, %s300
      %p302 = scmp.eq.s32.totalorder %s40, 0
      %p303 = por %p301, %p302
      %s305 = sadd.s32 %s304, 1
      %p308 = scmp.eq.s32.totalorder %s34, 1
      %p309 = scmp.ne.s32.totalorder %s304, %s306
      %p310 = scmp.eq.s32.totalorder %s34, 0
      %p311 = por %p309, %p310
      %p312 = scmp.ne.s32.totalorder %s304, %s306
      %p313 = scmp.eq.s32.totalorder %s39, 1
      %p314 = por %p312, %p313
      %p315 = scmp.ne.s32.totalorder %s306, %s307
      %p316 = scmp.eq.s32.totalorder %s39, 0
      %p317 = por %p315, %p316
      %p318 = scmp.ne.s32.totalorder %s306, %s307
      %p319 = scmp.eq.s32.totalorder %s40, 1
      %p320 = por %p318, %p319
      %p322 = scmp.ne.s32.totalorder %s307, %s321
      %p323 = scmp.eq.s32.totalorder %s40, 0
      %p324 = por %p322, %p323
      %s326 = sadd.s32 %s325, 1
      %p329 = scmp.eq.s32.totalorder %s34, 1
      %p330 = scmp.ne.s32.totalorder %s325, %s327
      %p331 = scmp.eq.s32.totalorder %s34, 0
      %p332 = por %p330, %p331
      %p333 = scmp.ne.s32.totalorder %s325, %s327
      %p334 = scmp.eq.s32.totalorder %s39, 1
      %p335 = por %p333, %p334
      %p336 = scmp.ne.s32.totalorder %s327, %s328
      %p337 = scmp.eq.s32.totalorder %s39, 0
      %p338 = por %p336, %p337
      %p339 = scmp.ne.s32.totalorder %s327, %s328
      %p340 = scmp.eq.s32.totalorder %s40, 1
      %p341 = por %p339, %p340
      %p343 = scmp.ne.s32.totalorder %s328, %s342
      %p344 = scmp.eq.s32.totalorder %s40, 0
      %p345 = por %p343, %p344
      %s347 = sadd.s32 %s346, 1
      %p350 = scmp.eq.s32.totalorder %s34, 1
      %p351 = scmp.ne.s32.totalorder %s346, %s348
      %p352 = scmp.eq.s32.totalorder %s34, 0
      %p353 = por %p351, %p352
      %p354 = scmp.ne.s32.totalorder %s346, %s348
      %p355 = scmp.eq.s32.totalorder %s39, 1
      %p356 = por %p354, %p355
      %p357 = scmp.ne.s32.totalorder %s348, %s349
      %p358 = scmp.eq.s32.totalorder %s39, 0
      %p359 = por %p357, %p358
      %p360 = scmp.ne.s32.totalorder %s348, %s349
      %p361 = scmp.eq.s32.totalorder %s40, 1
      %p362 = por %p360, %p361
      %p364 = scmp.ne.s32.totalorder %s349, %s363
      %p365 = scmp.eq.s32.totalorder %s40, 0
      %p366 = por %p364, %p365
      %s368 = sadd.s32 %s367, 1
      %p371 = scmp.eq.s32.totalorder %s34, 1
      %p372 = scmp.ne.s32.totalorder %s367, %s369
      %p373 = scmp.eq.s32.totalorder %s34, 0
      %p374 = por %p372, %p373
      %p375 = scmp.ne.s32.totalorder %s367, %s369
      %p376 = scmp.eq.s32.totalorder %s39, 1
      %p377 = por %p375, %p376
      %p378 = scmp.ne.s32.totalorder %s369, %s370
      %p379 = scmp.eq.s32.totalorder %s39, 0
      %p380 = por %p378, %p379
      %p381 = scmp.ne.s32.totalorder %s369, %s370
      %p382 = scmp.eq.s32.totalorder %s40, 1
      %p383 = por %p381, %p382
      %p385 = scmp.ne.s32.totalorder %s370, %s384
      %p386 = scmp.eq.s32.totalorder %s40, 0
      %p387 = por %p385, %p386
      %s388 = ssub.s32 %s34, %s41
      %p389 = scmp.eq.s32.totalorder %s388, 0
      %s391 = sadd.s32 %s390, 1
      %s392 = scalar_select %p389, %s390, %s391
      %p395 = pneg %p389
      %p396 = scmp.eq.s32.totalorder %s34, 1
      %p397 = por %p395, %p396
      %p398 = scmp.ne.s32.totalorder %s390, %s393
      %p399 = scmp.eq.s32.totalorder %s34, 0
      %p400 = por %p398, %p399
      %p401 = scmp.ne.s32.totalorder %s390, %s393
      %p402 = scmp.eq.s32.totalorder %s39, 1
      %p403 = por %p401, %p402
      %p404 = scmp.ne.s32.totalorder %s393, %s394
      %p405 = scmp.eq.s32.totalorder %s39, 0
      %p406 = por %p404, %p405
      %p407 = scmp.ne.s32.totalorder %s393, %s394
      %p408 = scmp.eq.s32.totalorder %s40, 1
      %p409 = por %p407, %p408
      %p411 = scmp.ne.s32.totalorder %s394, %s410
      %p412 = scmp.eq.s32.totalorder %s40, 0
      %p413 = por %p411, %p412
      %p414 = scmp.le.s32.totalorder 1, %s34
      %p415 = scmp.lt.s32.totalorder %s34, 3
      %p416 = pnand %p414, %p415
      %p417 = pneg %p416
      // Predicated region
      $region9: #{tpu_custom_call.1} parent=5 // pred_check
        _
      $region10: #{tpu_custom_call.1} parent=5 // pred_check_branch
        %419 = sbr.rel (%p416) target = $region12
      $region11: #{tpu_custom_call.1} parent=5 // pred_region
        %s420 = ssub.s32 %s34, 1
        // Predicated region
        $region13: #{tpu_custom_call.1} parent=11 // pred_check
          %p421 = pneg %p107
        $region14: #{tpu_custom_call.1} parent=11 // pred_check_branch
          %423 = sbr.rel (%p421) target = $region16
        $region15: #{tpu_custom_call.1} parent=11 // pred_region
          %425 = vsyncadd [#allocation6], 0
          %s427 = sshll.u32 %s2, 4
          %s428 = int_to_ptr.hbm [resolvable:$true] %s427
          %s429 = sshll.u32 [#allocation7], 4
          %s430 = int_to_ptr.vmem [resolvable:$true] %s429
          %432 = dma.hbm_to_vmem [thread:$0]  %s428, 16, %s430, [#allocation6]
        $region16: #{tpu_custom_call.1} parent=11 // pred_fallthru
          _
        // Predicated region
        $region17: #{tpu_custom_call.1} parent=11 // pred_check
          %p433 = pneg %p128
        $region18: #{tpu_custom_call.1} parent=11 // pred_check_branch
          %435 = sbr.rel (%p433) target = $region20
        $region19: #{tpu_custom_call.1} parent=11 // pred_region
          %437 = vsyncadd [#allocation9], 0
          %s439 = sshll.u32 %s3, 4
          %s440 = int_to_ptr.hbm [resolvable:$true] %s439
          %s441 = sshll.u32 [#allocation8], 4
          %s442 = int_to_ptr.vmem [resolvable:$true] %s441
          %444 = dma.hbm_to_vmem [thread:$0]  %s440, 16, %s442, [#allocation9]
        $region20: #{tpu_custom_call.1} parent=11 // pred_fallthru
          _
        // Predicated region
        $region21: #{tpu_custom_call.1} parent=11 // pred_check
          %p445 = pneg %p149
        $region22: #{tpu_custom_call.1} parent=11 // pred_check_branch
          %447 = sbr.rel (%p445) target = $region24
        $region23: #{tpu_custom_call.1} parent=11 // pred_region
          %449 = vsyncadd [#allocation9], 0
          %s450 = sshll.u32 %s4, 4
          %s451 = int_to_ptr.hbm [resolvable:$true] %s450
          %s452 = sshll.u32 [#allocation10], 4
          %s453 = int_to_ptr.vmem [resolvable:$true] %s452
          %458 = dma.hbm_to_vmem [thread:$0]  %s451, 6144, %s453, [#allocation9], 192, 192, 12
        $region24: #{tpu_custom_call.1} parent=11 // pred_fallthru
          _
        // Predicated region
        $region25: #{tpu_custom_call.1} parent=11 // pred_check
          %p459 = pneg %p170
        $region26: #{tpu_custom_call.1} parent=11 // pred_check_branch
          %461 = sbr.rel (%p459) target = $region28
        $region27: #{tpu_custom_call.1} parent=11 // pred_region
          %463 = vsyncadd [#allocation12], 0
          %s464 = sshll.u32 %s5, 4
          %s465 = int_to_ptr.hbm [resolvable:$true] %s464
          %s466 = sshll.u32 [#allocation11], 4
          %s467 = int_to_ptr.vmem [resolvable:$true] %s466
          %472 = dma.hbm_to_vmem [thread:$0]  %s465, 96, %s467, [#allocation12], 48, 48, 3
        $region28: #{tpu_custom_call.1} parent=11 // pred_fallthru
          _
        // Predicated region
        $region29: #{tpu_custom_call.1} parent=11 // pred_check
          %p473 = pneg %p191
        $region30: #{tpu_custom_call.1} parent=11 // pred_check_branch
          %475 = sbr.rel (%p473) target = $region32
        $region31: #{tpu_custom_call.1} parent=11 // pred_region
          %477 = vsyncadd [#allocation12], 0
          %s478 = sshll.u32 %s6, 4
          %s479 = int_to_ptr.hbm [resolvable:$true] %s478
          %s480 = sshll.u32 [#allocation13], 4
          %s481 = int_to_ptr.vmem [resolvable:$true] %s480
          %486 = dma.hbm_to_vmem [thread:$0]  %s479, 512, %s481, [#allocation12], 64, 64, 4
        $region32: #{tpu_custom_call.1} parent=11 // pred_fallthru
          _
        // Predicated region
        $region33: #{tpu_custom_call.1} parent=11 // pred_check
          %p487 = pneg %p212
        $region34: #{tpu_custom_call.1} parent=11 // pred_check_branch
          %489 = sbr.rel (%p487) target = $region36
        $region35: #{tpu_custom_call.1} parent=11 // pred_region
          _
        $region36: #{tpu_custom_call.1} parent=11 // pred_fallthru
          _
        // Predicated region
        $region37: #{tpu_custom_call.1} parent=11 // pred_check
          %p490 = pneg %p233
        $region38: #{tpu_custom_call.1} parent=11 // pred_check_branch
          %492 = sbr.rel (%p490) target = $region40
        $region39: #{tpu_custom_call.1} parent=11 // pred_region
          _
        $region40: #{tpu_custom_call.1} parent=11 // pred_fallthru
          _
        // Predicated region
        $region41: #{tpu_custom_call.1} parent=11 // pred_check
          %p493 = pneg %p254
        $region42: #{tpu_custom_call.1} parent=11 // pred_check_branch
          %495 = sbr.rel (%p493) target = $region44
        $region43: #{tpu_custom_call.1} parent=11 // pred_region
          _
        $region44: #{tpu_custom_call.1} parent=11 // pred_fallthru
          _
        // Predicated region
        $region45: #{tpu_custom_call.1} parent=11 // pred_check
          %p496 = pneg %p275
        $region46: #{tpu_custom_call.1} parent=11 // pred_check_branch
          %498 = sbr.rel (%p496) target = $region48
        $region47: #{tpu_custom_call.1} parent=11 // pred_region
          %500 = vsyncadd [#allocation15], 0
          %s501 = sshll.u32 %s10, 4
          %s502 = int_to_ptr.hbm [resolvable:$true] %s501
          %s503 = sshll.u32 [#allocation14], 4
          %s504 = int_to_ptr.vmem [resolvable:$true] %s503
          %509 = dma.hbm_to_vmem [thread:$0]  %s502, 2048, %s504, [#allocation15], 64, 64, 4
        $region48: #{tpu_custom_call.1} parent=11 // pred_fallthru
          _
        // Predicated region
        $region49: #{tpu_custom_call.1} parent=11 // pred_check
          %p510 = pneg %p296
        $region50: #{tpu_custom_call.1} parent=11 // pred_check_branch
          %512 = sbr.rel (%p510) target = $region52
        $region51: #{tpu_custom_call.1} parent=11 // pred_region
          _
        $region52: #{tpu_custom_call.1} parent=11 // pred_fallthru
          _
        // Predicated region
        $region53: #{tpu_custom_call.1} parent=11 // pred_check
          %p513 = pneg %p317
        $region54: #{tpu_custom_call.1} parent=11 // pred_check_branch
          %515 = sbr.rel (%p513) target = $region56
        $region55: #{tpu_custom_call.1} parent=11 // pred_region
          %517 = vsyncadd [#allocation15], 0
          %s518 = sshll.u32 %s12, 4
          %s519 = int_to_ptr.hbm [resolvable:$true] %s518
          %s520 = sshll.u32 [#allocation16], 4
          %s521 = int_to_ptr.vmem [resolvable:$true] %s520
          %526 = dma.hbm_to_vmem [thread:$0]  %s519, 2048, %s521, [#allocation15], 64, 64, 4
        $region56: #{tpu_custom_call.1} parent=11 // pred_fallthru
          _
        // Predicated region
        $region57: #{tpu_custom_call.1} parent=11 // pred_check
          %p527 = pneg %p338
        $region58: #{tpu_custom_call.1} parent=11 // pred_check_branch
          %529 = sbr.rel (%p527) target = $region60
        $region59: #{tpu_custom_call.1} parent=11 // pred_region
          _
        $region60: #{tpu_custom_call.1} parent=11 // pred_fallthru
          _
        // Predicated region
        $region61: #{tpu_custom_call.1} parent=11 // pred_check
          %p530 = pneg %p359
        $region62: #{tpu_custom_call.1} parent=11 // pred_check_branch
          %532 = sbr.rel (%p530) target = $region64
        $region63: #{tpu_custom_call.1} parent=11 // pred_region
          _
        $region64: #{tpu_custom_call.1} parent=11 // pred_fallthru
          _
        // Predicated region
        $region65: #{tpu_custom_call.1} parent=11 // pred_check
          %p533 = pneg %p380
        $region66: #{tpu_custom_call.1} parent=11 // pred_check_branch
          %535 = sbr.rel (%p533) target = $region68
        $region67: #{tpu_custom_call.1} parent=11 // pred_region
          _
        $region68: #{tpu_custom_call.1} parent=11 // pred_fallthru
          _
      $region12: #{tpu_custom_call.1} parent=5 // pred_fallthru
        _
      %p536 = scmp.lt.s32.totalorder %s34, 2
      // Predicated region
      $region69: #{tpu_custom_call.1} parent=5 // pred_check
        %p537 = pneg %p536
      $region70: #{tpu_custom_call.1} parent=5 // pred_check_branch
        %539 = sbr.rel (%p537) target = $region72
      $region71: #{tpu_custom_call.1} parent=5 // pred_region
        // Predicated region
        $region73: #{tpu_custom_call.1} parent=71 // pred_check
          %p540 = pneg %p54
        $region74: #{tpu_custom_call.1} parent=71 // pred_check_branch
          %542 = sbr.rel (%p540) target = $region76
        $region75: #{tpu_custom_call.1} parent=71 // pred_region
          %s543 = sand.u32 %s44, 1
          %s544 = scalar_lea.sflag [#allocation3], %s543
          %s545 = sand.u32 %s44, 1
          %s546 = smul.addr %s545, 8
          %s547 = scalar_lea.vmem [#allocation2], %s546
          %549 = vsyncadd %s544, 0
          %s550 = smul.addr %s34, 8
          %s551 = scalar_lea.hbm %s0, %s550
          %s553 = sshll.u32 %s551, 4
          %s554 = int_to_ptr.hbm [resolvable:$true] %s553
          %s555 = sshll.u32 %s547, 4
          %s556 = int_to_ptr.vmem [resolvable:$true] %s555
          %558 = dma.hbm_to_vmem [thread:$0]  %s554, 128, %s556, %s544
        $region76: #{tpu_custom_call.1} parent=71 // pred_fallthru
          _
        // Predicated region
        $region77: #{tpu_custom_call.1} parent=71 // pred_check
          %p559 = pneg %p80
        $region78: #{tpu_custom_call.1} parent=71 // pred_check_branch
          %561 = sbr.rel (%p559) target = $region80
        $region79: #{tpu_custom_call.1} parent=71 // pred_region
          %s562 = sand.u32 %s34, 1
          %s563 = scalar_lea.sflag [#allocation6], %s562
          %s564 = sand.u32 %s70, 1
          %s565 = smul.addr %s564, 8
          %s566 = scalar_lea.vmem [#allocation5], %s565
          %568 = vsyncadd %s563, 0
          %s569 = smul.addr %s34, 8
          %s570 = scalar_lea.hbm %s1, %s569
          %s572 = sshll.u32 %s570, 4
          %s573 = int_to_ptr.hbm [resolvable:$true] %s572
          %s574 = sshll.u32 %s566, 4
          %s575 = int_to_ptr.vmem [resolvable:$true] %s574
          %577 = dma.hbm_to_vmem [thread:$0]  %s573, 128, %s575, %s563
        $region80: #{tpu_custom_call.1} parent=71 // pred_fallthru
          _
      $region72: #{tpu_custom_call.1} parent=5 // pred_fallthru
        _
      %p578 = scmp.le.s32.totalorder 1, %s34
      %p579 = scmp.lt.s32.totalorder %s34, 3
      %p580 = pnand %p578, %p579
      %p581 = pneg %p580
      // Predicated region
      $region81: #{tpu_custom_call.1} parent=5 // pred_check
        _
      $region82: #{tpu_custom_call.1} parent=5 // pred_check_branch
        %583 = sbr.rel (%p580) target = $region84
      $region83: #{tpu_custom_call.1} parent=5 // pred_region
        %s584 = ssub.s32 %s34, 1
        %s585 = sand.u32 %s47, 1
        %s586 = scalar_lea.sflag [#allocation3], %s585
        %s587 = sand.u32 %s47, 1
        %s588 = smul.addr %s587, 8
        %s589 = scalar_lea.vmem [#allocation2], %s588
        // Predicated region
        $region85: #{tpu_custom_call.1} parent=83 // pred_check
          %p590 = pneg %p60
        $region86: #{tpu_custom_call.1} parent=83 // pred_check_branch
          %592 = sbr.rel (%p590) target = $region88
        $region87: #{tpu_custom_call.1} parent=83 // pred_region
          %594 = dma.done %s586, 128
        $region88: #{tpu_custom_call.1} parent=83 // pred_fallthru
          _
        %s595 = sand.u32 %s39, 1
        %s596 = scalar_lea.sflag [#allocation6], %s595
        %s597 = sand.u32 %s73, 1
        %s598 = smul.addr %s597, 8
        %s599 = scalar_lea.vmem [#allocation5], %s598
        // Predicated region
        $region89: #{tpu_custom_call.1} parent=83 // pred_check
          %p600 = pneg %p86
        $region90: #{tpu_custom_call.1} parent=83 // pred_check_branch
          %602 = sbr.rel (%p600) target = $region92
        $region91: #{tpu_custom_call.1} parent=83 // pred_region
          %604 = dma.done %s596, 128
        $region92: #{tpu_custom_call.1} parent=83 // pred_fallthru
          _
        // Predicated region
        $region93: #{tpu_custom_call.1} parent=83 // pred_check
          %p605 = pneg %p107
        $region94: #{tpu_custom_call.1} parent=83 // pred_check_branch
          %607 = sbr.rel (%p605) target = $region96
        $region95: #{tpu_custom_call.1} parent=83 // pred_region
          %609 = dma.done [#allocation6], 16
        $region96: #{tpu_custom_call.1} parent=83 // pred_fallthru
          _
        // Predicated region
        $region97: #{tpu_custom_call.1} parent=83 // pred_check
          %p610 = pneg %p128
        $region98: #{tpu_custom_call.1} parent=83 // pred_check_branch
          %612 = sbr.rel (%p610) target = $region100
        $region99: #{tpu_custom_call.1} parent=83 // pred_region
          %614 = dma.done [#allocation9], 16
        $region100: #{tpu_custom_call.1} parent=83 // pred_fallthru
          _
        // Predicated region
        $region101: #{tpu_custom_call.1} parent=83 // pred_check
          %p615 = pneg %p149
        $region102: #{tpu_custom_call.1} parent=83 // pred_check_branch
          %617 = sbr.rel (%p615) target = $region104
        $region103: #{tpu_custom_call.1} parent=83 // pred_region
          %619 = dma.done [#allocation9], 6144
        $region104: #{tpu_custom_call.1} parent=83 // pred_fallthru
          _
        // Predicated region
        $region105: #{tpu_custom_call.1} parent=83 // pred_check
          %p620 = pneg %p170
        $region106: #{tpu_custom_call.1} parent=83 // pred_check_branch
          %622 = sbr.rel (%p620) target = $region108
        $region107: #{tpu_custom_call.1} parent=83 // pred_region
          %624 = dma.done [#allocation12], 96
        $region108: #{tpu_custom_call.1} parent=83 // pred_fallthru
          _
        // Predicated region
        $region109: #{tpu_custom_call.1} parent=83 // pred_check
          %p625 = pneg %p191
        $region110: #{tpu_custom_call.1} parent=83 // pred_check_branch
          %627 = sbr.rel (%p625) target = $region112
        $region111: #{tpu_custom_call.1} parent=83 // pred_region
          %629 = dma.done [#allocation12], 512
        $region112: #{tpu_custom_call.1} parent=83 // pred_fallthru
          _
        // Predicated region
        $region113: #{tpu_custom_call.1} parent=83 // pred_check
          %p630 = pneg %p275
        $region114: #{tpu_custom_call.1} parent=83 // pred_check_branch
          %632 = sbr.rel (%p630) target = $region116
        $region115: #{tpu_custom_call.1} parent=83 // pred_region
          %634 = dma.done [#allocation15], 2048
        $region116: #{tpu_custom_call.1} parent=83 // pred_fallthru
          _
        // Predicated region
        $region117: #{tpu_custom_call.1} parent=83 // pred_check
          %p635 = pneg %p317
        $region118: #{tpu_custom_call.1} parent=83 // pred_check_branch
          %637 = sbr.rel (%p635) target = $region120
        $region119: #{tpu_custom_call.1} parent=83 // pred_region
          %639 = dma.done [#allocation15], 2048
        $region120: #{tpu_custom_call.1} parent=83 // pred_fallthru
          _
        %s640 = sand.u32 %s47, 1
        %s641 = scalar_lea.sflag [#allocation3], %s640
        %s642 = sand.u32 %s47, 1
        %s643 = smul.addr %s642, 8
        %s644 = scalar_lea.vmem [#allocation2], %s643
        %p645 = pneg %p60
        %p646 = pneg %p57
        %s647 = sand.u32 %s39, 1
        %s648 = scalar_lea.sflag [#allocation6], %s647
        %s649 = sand.u32 %s73, 1
        %s650 = smul.addr %s649, 8
        %s651 = scalar_lea.vmem [#allocation5], %s650
        %p652 = pneg %p86
        %p653 = pneg %p83
        %p654 = pneg %p107
        %p655 = pneg %p104
        %p656 = pneg %p128
        %p657 = pneg %p125
        %p658 = pneg %p149
        %p659 = pneg %p146
        %p660 = pneg %p170
        %p661 = pneg %p167
        %p662 = pneg %p191
        %p663 = pneg %p188
        %p664 = pneg %p212
        %p665 = pneg %p209
        %p666 = pneg %p233
        %p667 = pneg %p230
        %p668 = pneg %p254
        %p669 = pneg %p251
        %p670 = pneg %p275
        %p671 = pneg %p272
        %p672 = pneg %p296
        %p673 = pneg %p293
        %p674 = pneg %p317
        %p675 = pneg %p314
        %p676 = pneg %p338
        %p677 = pneg %p335
        %p678 = pneg %p359
        %p679 = pneg %p356
        %p680 = pneg %p380
        %p681 = pneg %p377
        %p682 = pneg %p406
        %p683 = pneg %p403
        %s684 = sand.u32 %s393, 1
        %s685 = scalar_lea.sflag [#allocation4], %s684
        %s686 = sand.u32 %s393, 1
        %s687 = smul.addr %s686, 16
        %s688 = scalar_lea.vmem [#allocation17], %s687
        %v690 = vld [vmem:[%s599] sm:$0xff]
        %v691 = vperm.slane %v690, 0
        %v692 = vld [vmem:[%s589] sm:$0xff]
        %v693 = vld [vmem:[#allocation7] sm:$0x1]
        %v694 = vld [vmem:[#allocation8] sm:$0x1]
        %695 = vadd.xlane.f32.xlu0 %v692
        %v696 = vpop.xlane.xlu0 %695
        %v697 = vmul.f32 %v696, 0.03125
        %v698 = vmul.f32 %v692, %v692
        %699 = vadd.xlane.f32.xlu0 %v698
        %v700 = vpop.xlane.xlu0 %699
        %v701 = vmul.f32 %v700, 0.03125
        %v702 = vmul.f32 %v697, %v697
        %v703 = vsub.f32 %v701, %v702
        %v704 = vsub.f32 %v692, %v697
        %v705 = vadd.f32 %v703, 1e-12
        %v706 = vrsqrt.pop %v705
        %v707 = vmul.f32 %v706, %v705
        %v708 = vmul.f32 %v707, %v706
        %v709 = vmul.f32 0.5, %v708
        %v710 = vsub.f32 1.5, %v709
        %v711 = vmul.f32 %v706, %v710
        %vm712 = vweird.f32 %v705
        %vm713 = vweird.f32 %v706
        %vm714 = vmor %vm712, %vm713
        %v715 = vsel %vm714, %v706, %v711
        %v716 = vmul.f32 %v704, %v715
        %v718 = vperm.slane %v693, 0
        %v720 = vmul.f32 %v716, %v718
        %v722 = vperm.slane %v694, 0
        %v724 = vadd.f32 %v720, %v722
        %v725 = vpack.c.bf16 %v724, %v724
        %v726 = vld [vmem:[#allocation10] sm:$0xff]
        %v727 = vld [vmem:[#allocation10 + $0x8] sm:$0xf]
        %v728 = vld [vmem:[#allocation10 + $0xc] sm:$0xff]
        %v729 = vld [vmem:[#allocation10 + $0x14] sm:$0xf]
        %v730 = vld [vmem:[#allocation10 + $0x18] sm:$0xff]
        %v731 = vld [vmem:[#allocation10 + $0x20] sm:$0xf]
        %v732 = vld [vmem:[#allocation10 + $0x24] sm:$0xff]
        %v733 = vld [vmem:[#allocation10 + $0x2c] sm:$0xf]
        %v734 = vld [vmem:[#allocation10 + $0x30] sm:$0xff]
        %v735 = vld [vmem:[#allocation10 + $0x38] sm:$0xf]
        %v736 = vld [vmem:[#allocation10 + $0x3c] sm:$0xff]
        %v737 = vld [vmem:[#allocation10 + $0x44] sm:$0xf]
        %v738 = vld [vmem:[#allocation10 + $0x48] sm:$0xff]
        %v739 = vld [vmem:[#allocation10 + $0x50] sm:$0xf]
        %v740 = vld [vmem:[#allocation10 + $0x54] sm:$0xff]
        %v741 = vld [vmem:[#allocation10 + $0x5c] sm:$0xf]
        %v742 = vld [vmem:[#allocation10 + $0x60] sm:$0xff]
        %v743 = vld [vmem:[#allocation10 + $0x68] sm:$0xf]
        %v744 = vld [vmem:[#allocation10 + $0x6c] sm:$0xff]
        %v745 = vld [vmem:[#allocation10 + $0x74] sm:$0xf]
        %v746 = vld [vmem:[#allocation10 + $0x78] sm:$0xff]
        %v747 = vld [vmem:[#allocation10 + $0x80] sm:$0xf]
        %v748 = vld [vmem:[#allocation10 + $0x84] sm:$0xff]
        %v749 = vld [vmem:[#allocation10 + $0x8c] sm:$0xf]
        %v750 = vld [vmem:[#allocation10 + $0x90] sm:$0xff]
        %v751 = vld [vmem:[#allocation10 + $0x98] sm:$0xf]
        %v752 = vld [vmem:[#allocation10 + $0x9c] sm:$0xff]
        %v753 = vld [vmem:[#allocation10 + $0xa4] sm:$0xf]
        %v754 = vld [vmem:[#allocation10 + $0xa8] sm:$0xff]
        %v755 = vld [vmem:[#allocation10 + $0xb0] sm:$0xf]
        %v756 = vld [vmem:[#allocation10 + $0xb4] sm:$0xff]
        %v757 = vld [vmem:[#allocation10 + $0xbc] sm:$0xf]
        %v758 = vld [vmem:[#allocation11] sm:$0x7]
        %v760 = vperm.slane %v758, 0
        %v761 = vperm.slane %v758, 1
        %v762 = vperm.slane %v758, 2
        %v798 = vunpack.c.l.b16 %v726
        %v799 = vunpack.c.h.b16 %v726
        %v800 = vunpack.c.l.b16 %v727
        %v801 = vunpack.c.l.b16 %v728
        %v802 = vunpack.c.h.b16 %v728
        %v803 = vunpack.c.l.b16 %v729
        %v804 = vunpack.c.l.b16 %v730
        %v805 = vunpack.c.h.b16 %v730
        %v806 = vunpack.c.l.b16 %v731
        %v807 = vunpack.c.l.b16 %v732
        %v808 = vunpack.c.h.b16 %v732
        %v809 = vunpack.c.l.b16 %v733
        %v810 = vunpack.c.l.b16 %v734
        %v811 = vunpack.c.h.b16 %v734
        %v812 = vunpack.c.l.b16 %v735
        %v813 = vunpack.c.l.b16 %v736
        %v814 = vunpack.c.h.b16 %v736
        %v815 = vunpack.c.l.b16 %v737
        %v816 = vunpack.c.l.b16 %v738
        %v817 = vunpack.c.h.b16 %v738
        %v818 = vunpack.c.l.b16 %v739
        %v819 = vunpack.c.l.b16 %v740
        %v820 = vunpack.c.h.b16 %v740
        %v821 = vunpack.c.l.b16 %v741
        %v822 = vunpack.c.l.b16 %v742
        %v823 = vunpack.c.h.b16 %v742
        %v824 = vunpack.c.l.b16 %v743
        %v825 = vunpack.c.l.b16 %v744
        %v826 = vunpack.c.h.b16 %v744
        %v827 = vunpack.c.l.b16 %v745
        %v828 = vunpack.c.l.b16 %v746
        %v829 = vunpack.c.h.b16 %v746
        %v830 = vunpack.c.l.b16 %v747
        %v831 = vunpack.c.l.b16 %v748
        %v832 = vunpack.c.h.b16 %v748
        %v833 = vunpack.c.l.b16 %v749
        %v834 = vunpack.c.l.b16 %v750
        %v835 = vunpack.c.h.b16 %v750
        %v836 = vunpack.c.l.b16 %v751
        %v837 = vunpack.c.l.b16 %v752
        %v838 = vunpack.c.h.b16 %v752
        %v839 = vunpack.c.l.b16 %v753
        %v840 = vunpack.c.l.b16 %v754
        %v841 = vunpack.c.h.b16 %v754
        %v842 = vunpack.c.l.b16 %v755
        %v843 = vunpack.c.l.b16 %v756
        %v844 = vunpack.c.h.b16 %v756
        %v845 = vunpack.c.l.b16 %v757
        %v846 = vpack.c.b16 %v801, %v798
        %v847 = vpack.c.b16 %v802, %v799
        %v848 = vpack.c.b16 %v803, %v800
        %v849 = vpack.c.b16 %v807, %v804
        %v850 = vpack.c.b16 %v808, %v805
        %v851 = vpack.c.b16 %v809, %v806
        %v852 = vpack.c.b16 %v813, %v810
        %v853 = vpack.c.b16 %v814, %v811
        %v854 = vpack.c.b16 %v815, %v812
        %v855 = vpack.c.b16 %v819, %v816
        %v856 = vpack.c.b16 %v820, %v817
        %v857 = vpack.c.b16 %v821, %v818
        %v858 = vpack.c.b16 %v825, %v822
        %v859 = vpack.c.b16 %v826, %v823
        %v860 = vpack.c.b16 %v827, %v824
        %v861 = vpack.c.b16 %v831, %v828
        %v862 = vpack.c.b16 %v832, %v829
        %v863 = vpack.c.b16 %v833, %v830
        %v864 = vpack.c.b16 %v837, %v834
        %v865 = vpack.c.b16 %v838, %v835
        %v866 = vpack.c.b16 %v839, %v836
        %v867 = vpack.c.b16 %v843, %v840
        %v868 = vpack.c.b16 %v844, %v841
        %v869 = vpack.c.b16 %v845, %v842
        %894 = vmatpush.bf16.msra.mxu0 %v867
        %895 = vmatpush.bf16.msra.mxu0 %v864
        %896 = vmatpush.bf16.msra.mxu0 %v861
        %897 = vmatpush.bf16.msra.mxu0 %v858
        %898 = vmatpush.bf16.msra.mxu0 %v855
        %899 = vmatpush.bf16.msra.mxu0 %v852
        %900 = vmatpush.bf16.msra.mxu0 %v849
        %901 = vmatpush.bf16.msra.mxu0 %v846
        %902 = vmatmul.bf16.gmra.mxu0 %v725
        %v903 = vpop.f32.mrf.mxu0
        %v904 = vadd.f32 %v760, %v903
        %v905 = vpop.f32.mrf.mxu0
        %906 = vdwg.mxu0
        %907 = vmatpush.bf16.msra.mxu0 %v868
        %908 = vmatpush.bf16.msra.mxu0 %v865
        %909 = vmatpush.bf16.msra.mxu0 %v862
        %910 = vmatpush.bf16.msra.mxu0 %v859
        %911 = vmatpush.bf16.msra.mxu0 %v856
        %912 = vmatpush.bf16.msra.mxu0 %v853
        %913 = vmatpush.bf16.msra.mxu0 %v850
        %914 = vmatpush.bf16.msra.mxu0 %v847
        %915 = vmatmul.bf16.gmra.mxu0 %v725
        %v916 = vpop.f32.mrf.mxu0
        %v917 = vadd.f32 %v761, %v916
        %v918 = vpop.f32.mrf.mxu0
        %919 = vdwg.mxu0
        %920 = vmatpush.bf16.msra.mxu0 %v869
        %921 = vmatpush.bf16.msra.mxu0 %v866
        %922 = vmatpush.bf16.msra.mxu0 %v863
        %923 = vmatpush.bf16.msra.mxu0 %v860
        %924 = vmatpush.bf16.msra.mxu0 %v857
        %925 = vmatpush.bf16.msra.mxu0 %v854
        %926 = vmatpush.bf16.msra.mxu0 %v851
        %927 = vmatpush.bf16.msra.mxu0 %v848
        %928 = vmatmul.bf16.gmra.mxu0 %v725
        %v929 = vpop.f32.mrf.mxu0
        %v930 = vadd.f32 %v762, %v929
        %v931 = vpop.f32.mrf.mxu0
        %932 = vdwg.mxu0
        %934 = vrot.lane.b32.xlu0 %v904, 120
        %v935 = vpop.permute.xlu0 %934
        %937 = vrot.lane.b32.xlu0 %v904, 112
        %v938 = vpop.permute.xlu0 %937
        %940 = vrot.lane.b32.xlu0 %v904, 104
        %v941 = vpop.permute.xlu0 %940
        %v943 = vpack.c.bf16 %v904, %v904
        %v944 = vpack.c.bf16 %v935, %v935
        %v945 = vpack.c.bf16 %v938, %v938
        %v946 = vpack.c.bf16 %v941, %v941
        %948 = vrot.lane.b32.xlu0 %v917, 120
        %v949 = vpop.permute.xlu0 %948
        %951 = vrot.lane.b32.xlu0 %v917, 112
        %v952 = vpop.permute.xlu0 %951
        %954 = vrot.lane.b32.xlu0 %v917, 104
        %v955 = vpop.permute.xlu0 %954
        %v957 = vpack.c.bf16 %v917, %v917
        %v958 = vpack.c.bf16 %v949, %v949
        %v959 = vpack.c.bf16 %v952, %v952
        %v960 = vpack.c.bf16 %v955, %v955
        %962 = vrot.lane.b32.xlu0 %v930, 120
        %v963 = vpop.permute.xlu0 %962
        %965 = vrot.lane.b32.xlu0 %v930, 112
        %v966 = vpop.permute.xlu0 %965
        %968 = vrot.lane.b32.xlu0 %v930, 104
        %v969 = vpop.permute.xlu0 %968
        %v971 = vpack.c.bf16 %v930, %v930
        %v972 = vpack.c.bf16 %v963, %v963
        %v973 = vpack.c.bf16 %v966, %v966
        %v974 = vpack.c.bf16 %v969, %v969
        %vm975 = vcmask 64512
        %v977 = vsel %vm975, %v943, 0
        %v980 = vsel %vm975, %v957, 0
        %982 = vmatpush.bf16.xpose.msra.mxu0 0
        %983 = vmatpush.bf16.xpose.msra.mxu0 0
        %984 = vmatpush.bf16.xpose.msra.mxu0 0
        %985 = vmatpush.bf16.xpose.msra.mxu0 0
        %986 = vmatpush.bf16.xpose.msra.mxu0 0
        %987 = vmatpush.bf16.xpose.msra.mxu0 0
        %988 = vmatpush.bf16.xpose.msra.mxu0 0
        %989 = vmatpush.bf16.xpose.msra.mxu0 %v980
        %990 = vmatmul.bf16.gmra.mxu0 %v977
        %v991 = vpop.f32.mrf.mxu0
        %v992 = vadd.f32 %v691, %v991
        %v993 = vpop.f32.mrf.mxu0
        %994 = vdwg.mxu0
        %v996 = vsel %vm975, %v944, 0
        %v999 = vsel %vm975, %v958, 0
        %1001 = vmatpush.bf16.xpose.msra.mxu0 0
        %1002 = vmatpush.bf16.xpose.msra.mxu0 0
        %1003 = vmatpush.bf16.xpose.msra.mxu0 0
        %1004 = vmatpush.bf16.xpose.msra.mxu0 0
        %1005 = vmatpush.bf16.xpose.msra.mxu0 0
        %1006 = vmatpush.bf16.xpose.msra.mxu0 0
        %1007 = vmatpush.bf16.xpose.msra.mxu0 0
        %1008 = vmatpush.bf16.xpose.msra.mxu0 %v999
        %1009 = vmatmul.bf16.gmra.mxu0 %v996
        %v1010 = vpop.f32.mrf.mxu0
        %v1011 = vadd.f32 %v691, %v1010
        %v1012 = vpop.f32.mrf.mxu0
        %1013 = vdwg.mxu0
        %v1015 = vsel %vm975, %v945, 0
        %v1018 = vsel %vm975, %v959, 0
        %1020 = vmatpush.bf16.xpose.msra.mxu0 0
        %1021 = vmatpush.bf16.xpose.msra.mxu0 0
        %1022 = vmatpush.bf16.xpose.msra.mxu0 0
        %1023 = vmatpush.bf16.xpose.msra.mxu0 0
        %1024 = vmatpush.bf16.xpose.msra.mxu0 0
        %1025 = vmatpush.bf16.xpose.msra.mxu0 0
        %1026 = vmatpush.bf16.xpose.msra.mxu0 0
        %1027 = vmatpush.bf16.xpose.msra.mxu0 %v1018
        %1028 = vmatmul.bf16.gmra.mxu0 %v1015
        %v1029 = vpop.f32.mrf.mxu0
        %v1030 = vadd.f32 %v691, %v1029
        %v1031 = vpop.f32.mrf.mxu0
        %1032 = vdwg.mxu0
        %v1034 = vsel %vm975, %v946, 0
        %v1037 = vsel %vm975, %v960, 0
        %1039 = vmatpush.bf16.xpose.msra.mxu0 0
        %1040 = vmatpush.bf16.xpose.msra.mxu0 0
        %1041 = vmatpush.bf16.xpose.msra.mxu0 0
        %1042 = vmatpush.bf16.xpose.msra.mxu0 0
        %1043 = vmatpush.bf16.xpose.msra.mxu0 0
        %1044 = vmatpush.bf16.xpose.msra.mxu0 0
        %1045 = vmatpush.bf16.xpose.msra.mxu0 0
        %1046 = vmatpush.bf16.xpose.msra.mxu0 %v1037
        %1047 = vmatmul.bf16.gmra.mxu0 %v1034
        %v1048 = vpop.f32.mrf.mxu0
        %v1049 = vadd.f32 %v691, %v1048
        %v1050 = vpop.f32.mrf.mxu0
        %1051 = vdwg.mxu0
        %v1052 = vsel %vm975, %v992, -inf
        %1053 = vmax.xlane.f32.xlu0 %v1052
        %v1054 = vpop.xlane.xlu0 %1053
        %v1055 = vsel %vm975, %v1011, -inf
        %1056 = vmax.xlane.f32.xlu0 %v1055
        %v1057 = vpop.xlane.xlu0 %1056
        %v1058 = vsel %vm975, %v1030, -inf
        %1059 = vmax.xlane.f32.xlu0 %v1058
        %v1060 = vpop.xlane.xlu0 %1059
        %v1061 = vsel %vm975, %v1049, -inf
        %1062 = vmax.xlane.f32.xlu0 %v1061
        %v1063 = vpop.xlane.xlu0 %1062
        %v1064 = vsub.f32 %v992, %v1054
        %v1065 = vsub.f32 %v1011, %v1057
        %v1066 = vsub.f32 %v1030, %v1060
        %v1067 = vsub.f32 %v1049, %v1063
        %v1068 = vmul.f32 %v1064, 1.442695
        %v1069 = vpow.pop %v1068
        %v1070 = vmul.f32 %v1065, 1.442695
        %v1071 = vpow.pop %v1070
        %v1072 = vmul.f32 %v1066, 1.442695
        %v1073 = vpow.pop %v1072
        %v1074 = vmul.f32 %v1067, 1.442695
        %v1075 = vpow.pop %v1074
        %v1076 = vsel %vm975, %v1069, 0.0
        %1077 = vadd.xlane.f32.xlu0 %v1076
        %v1078 = vpop.xlane.xlu0 %1077
        %v1079 = vsel %vm975, %v1071, 0.0
        %1080 = vadd.xlane.f32.xlu0 %v1079
        %v1081 = vpop.xlane.xlu0 %1080
        %v1082 = vsel %vm975, %v1073, 0.0
        %1083 = vadd.xlane.f32.xlu0 %v1082
        %v1084 = vpop.xlane.xlu0 %1083
        %v1085 = vsel %vm975, %v1075, 0.0
        %1086 = vadd.xlane.f32.xlu0 %v1085
        %v1087 = vpop.xlane.xlu0 %1086
        %v1088 = vrcp.pop %v1078
        %v1089 = vrcp.pop %v1081
        %v1090 = vrcp.pop %v1084
        %v1091 = vrcp.pop %v1087
        %v1092 = vmul.f32 %v1069, %v1088
        %v1093 = vmul.f32 %v1071, %v1089
        %v1094 = vmul.f32 %v1073, %v1090
        %v1095 = vmul.f32 %v1075, %v1091
        %v1096 = vpack.c.bf16 %v1092, %v1092
        %v1097 = vpack.c.bf16 %v1093, %v1093
        %v1098 = vpack.c.bf16 %v1094, %v1094
        %v1099 = vpack.c.bf16 %v1095, %v1095
        %v1101 = vsel %vm975, %v1096, 0
        %vm1103 = vcmask 1043456
        %v1105 = vsel %vm1103, %v971, 0
        %1107 = vmatpush.bf16.msra.mxu0 0
        %1108 = vmatpush.bf16.msra.mxu0 0
        %1109 = vmatpush.bf16.msra.mxu0 0
        %1110 = vmatpush.bf16.msra.mxu0 0
        %1111 = vmatpush.bf16.msra.mxu0 0
        %1112 = vmatpush.bf16.msra.mxu0 0
        %1113 = vmatpush.bf16.msra.mxu0 0
        %1114 = vmatpush.bf16.msra.mxu0 %v1105
        %1115 = vmatmul.bf16.gmra.mxu0 %v1101
        %v1116 = vpop.f32.mrf.mxu0
        %v1117 = vadd.f32 0.0, %v1116
        %v1118 = vpop.f32.mrf.mxu0
        %1119 = vdwg.mxu0
        %v1121 = vsel %vm975, %v1097, 0
        %v1124 = vsel %vm1103, %v972, 0
        %1126 = vmatpush.bf16.msra.mxu0 0
        %1127 = vmatpush.bf16.msra.mxu0 0
        %1128 = vmatpush.bf16.msra.mxu0 0
        %1129 = vmatpush.bf16.msra.mxu0 0
        %1130 = vmatpush.bf16.msra.mxu0 0
        %1131 = vmatpush.bf16.msra.mxu0 0
        %1132 = vmatpush.bf16.msra.mxu0 0
        %1133 = vmatpush.bf16.msra.mxu0 %v1124
        %1134 = vmatmul.bf16.gmra.mxu0 %v1121
        %v1135 = vpop.f32.mrf.mxu0
        %v1136 = vadd.f32 0.0, %v1135
        %v1137 = vpop.f32.mrf.mxu0
        %1138 = vdwg.mxu0
        %v1140 = vsel %vm975, %v1098, 0
        %v1143 = vsel %vm1103, %v973, 0
        %1145 = vmatpush.bf16.msra.mxu0 0
        %1146 = vmatpush.bf16.msra.mxu0 0
        %1147 = vmatpush.bf16.msra.mxu0 0
        %1148 = vmatpush.bf16.msra.mxu0 0
        %1149 = vmatpush.bf16.msra.mxu0 0
        %1150 = vmatpush.bf16.msra.mxu0 0
        %1151 = vmatpush.bf16.msra.mxu0 0
        %1152 = vmatpush.bf16.msra.mxu0 %v1143
        %1153 = vmatmul.bf16.gmra.mxu0 %v1140
        %v1154 = vpop.f32.mrf.mxu0
        %v1155 = vadd.f32 0.0, %v1154
        %v1156 = vpop.f32.mrf.mxu0
        %1157 = vdwg.mxu0
        %v1159 = vsel %vm975, %v1099, 0
        %v1162 = vsel %vm1103, %v974, 0
        %1164 = vmatpush.bf16.msra.mxu0 0
        %1165 = vmatpush.bf16.msra.mxu0 0
        %1166 = vmatpush.bf16.msra.mxu0 0
        %1167 = vmatpush.bf16.msra.mxu0 0
        %1168 = vmatpush.bf16.msra.mxu0 0
        %1169 = vmatpush.bf16.msra.mxu0 0
        %1170 = vmatpush.bf16.msra.mxu0 0
        %1171 = vmatpush.bf16.msra.mxu0 %v1162
        %1172 = vmatmul.bf16.gmra.mxu0 %v1159
        %v1173 = vpop.f32.mrf.mxu0
        %v1174 = vadd.f32 0.0, %v1173
        %v1175 = vpop.f32.mrf.mxu0
        %1176 = vdwg.mxu0
        %v1177 = vpack.c.bf16 %v1117, %v1117
        %v1178 = vpack.c.bf16 %v1136, %v1136
        %v1179 = vpack.c.bf16 %v1155, %v1155
        %v1180 = vpack.c.bf16 %v1174, %v1174
        %v1181 = vld [vmem:[#allocation13] sm:$0xf]
        %v1182 = vld [vmem:[#allocation13 + $0x4] sm:$0xf]
        %v1183 = vld [vmem:[#allocation13 + $0x8] sm:$0xf]
        %v1184 = vld [vmem:[#allocation13 + $0xc] sm:$0xf]
        %v1186 = vsel %vm975, %v1177, 0
        %v1189 = vsel %vm1103, %v1181, 0
        %1191 = vmatpush.bf16.msra.mxu0 0
        %1192 = vmatpush.bf16.msra.mxu0 0
        %1193 = vmatpush.bf16.msra.mxu0 0
        %1194 = vmatpush.bf16.msra.mxu0 0
        %1195 = vmatpush.bf16.msra.mxu0 0
        %1196 = vmatpush.bf16.msra.mxu0 0
        %1197 = vmatpush.bf16.msra.mxu0 0
        %1198 = vmatpush.bf16.msra.mxu0 %v1189
        %1199 = vmatmul.bf16.gmra.mxu0 %v1186
        %v1200 = vpop.f32.mrf.mxu0
        %v1201 = vadd.f32 0.0, %v1200
        %v1202 = vpop.f32.mrf.mxu0
        %1203 = vdwg.mxu0
        %v1205 = vsel %vm975, %v1178, 0
        %v1208 = vsel %vm1103, %v1182, 0
        %1210 = vmatpush.bf16.msra.mxu0 0
        %1211 = vmatpush.bf16.msra.mxu0 0
        %1212 = vmatpush.bf16.msra.mxu0 0
        %1213 = vmatpush.bf16.msra.mxu0 0
        %1214 = vmatpush.bf16.msra.mxu0 0
        %1215 = vmatpush.bf16.msra.mxu0 0
        %1216 = vmatpush.bf16.msra.mxu0 0
        %1217 = vmatpush.bf16.msra.mxu0 %v1208
        %1218 = vmatmul.bf16.gmra.mxu0 %v1205
        %v1219 = vpop.f32.mrf.mxu0
        %v1220 = vadd.f32 0.0, %v1219
        %v1221 = vpop.f32.mrf.mxu0
        %1222 = vdwg.mxu0
        %v1224 = vsel %vm975, %v1179, 0
        %v1227 = vsel %vm1103, %v1183, 0
        %1229 = vmatpush.bf16.msra.mxu0 0
        %1230 = vmatpush.bf16.msra.mxu0 0
        %1231 = vmatpush.bf16.msra.mxu0 0
        %1232 = vmatpush.bf16.msra.mxu0 0
        %1233 = vmatpush.bf16.msra.mxu0 0
        %1234 = vmatpush.bf16.msra.mxu0 0
        %1235 = vmatpush.bf16.msra.mxu0 0
        %1236 = vmatpush.bf16.msra.mxu0 %v1227
        %1237 = vmatmul.bf16.gmra.mxu0 %v1224
        %v1238 = vpop.f32.mrf.mxu0
        %v1239 = vadd.f32 0.0, %v1238
        %v1240 = vpop.f32.mrf.mxu0
        %1241 = vdwg.mxu0
        %v1243 = vsel %vm975, %v1180, 0
        %v1246 = vsel %vm1103, %v1184, 0
        %1248 = vmatpush.bf16.msra.mxu0 0
        %1249 = vmatpush.bf16.msra.mxu0 0
        %1250 = vmatpush.bf16.msra.mxu0 0
        %1251 = vmatpush.bf16.msra.mxu0 0
        %1252 = vmatpush.bf16.msra.mxu0 0
        %1253 = vmatpush.bf16.msra.mxu0 0
        %1254 = vmatpush.bf16.msra.mxu0 0
        %1255 = vmatpush.bf16.msra.mxu0 %v1246
        %1256 = vmatmul.bf16.gmra.mxu0 %v1243
        %v1257 = vpop.f32.mrf.mxu0
        %v1258 = vadd.f32 0.0, %v1257
        %v1259 = vpop.f32.mrf.mxu0
        %1260 = vdwg.mxu0
        %v1261 = vadd.f32 %v1201, %v1220
        %v1262 = vadd.f32 %v1261, %v1239
        %v1263 = vadd.f32 %v1262, %v1258
        %v1264 = vld [vmem:[%s7] sm:$0x1]
        %v1266 = vperm.slane %v1264, 0
        %v1268 = vadd.f32 %v1263, %v1266
        %v1269 = vadd.f32 %v1268, %v724
        %v1270 = vld [vmem:[%s8] sm:$0x1]
        %v1271 = vld [vmem:[%s9] sm:$0x1]
        %1272 = vadd.xlane.f32.xlu0 %v1269
        %v1273 = vpop.xlane.xlu0 %1272
        %v1274 = vmul.f32 %v1273, 0.03125
        %v1275 = vmul.f32 %v1269, %v1269
        %1276 = vadd.xlane.f32.xlu0 %v1275
        %v1277 = vpop.xlane.xlu0 %1276
        %v1278 = vmul.f32 %v1277, 0.03125
        %v1279 = vmul.f32 %v1274, %v1274
        %v1280 = vsub.f32 %v1278, %v1279
        %v1281 = vsub.f32 %v1269, %v1274
        %v1282 = vadd.f32 %v1280, 1e-12
        %v1283 = vrsqrt.pop %v1282
        %v1284 = vmul.f32 %v1283, %v1282
        %v1285 = vmul.f32 %v1284, %v1283
        %v1286 = vmul.f32 0.5, %v1285
        %v1287 = vsub.f32 1.5, %v1286
        %v1288 = vmul.f32 %v1283, %v1287
        %vm1289 = vweird.f32 %v1282
        %vm1290 = vweird.f32 %v1283
        %vm1291 = vmor %vm1289, %vm1290
        %v1292 = vsel %vm1291, %v1283, %v1288
        %v1293 = vmul.f32 %v1281, %v1292
        %v1295 = vperm.slane %v1270, 0
        %v1297 = vmul.f32 %v1293, %v1295
        %v1299 = vperm.slane %v1271, 0
        %v1301 = vadd.f32 %v1297, %v1299
        %v1302 = vpack.c.bf16 %v1301, %v1301
        %v1303 = vld [vmem:[#allocation14] sm:$0xf]
        %v1304 = vld [vmem:[#allocation14 + $0x4] sm:$0xf]
        %v1305 = vld [vmem:[#allocation14 + $0x8] sm:$0xf]
        %v1306 = vld [vmem:[#allocation14 + $0xc] sm:$0xf]
        %v1307 = vld [vmem:[#allocation14 + $0x10] sm:$0xf]
        %v1308 = vld [vmem:[#allocation14 + $0x14] sm:$0xf]
        %v1309 = vld [vmem:[#allocation14 + $0x18] sm:$0xf]
        %v1310 = vld [vmem:[#allocation14 + $0x1c] sm:$0xf]
        %v1311 = vld [vmem:[#allocation14 + $0x20] sm:$0xf]
        %v1312 = vld [vmem:[#allocation14 + $0x24] sm:$0xf]
        %v1313 = vld [vmem:[#allocation14 + $0x28] sm:$0xf]
        %v1314 = vld [vmem:[#allocation14 + $0x2c] sm:$0xf]
        %v1315 = vld [vmem:[#allocation14 + $0x30] sm:$0xf]
        %v1316 = vld [vmem:[#allocation14 + $0x34] sm:$0xf]
        %v1317 = vld [vmem:[#allocation14 + $0x38] sm:$0xf]
        %v1318 = vld [vmem:[#allocation14 + $0x3c] sm:$0xf]
        %v1319 = vld [vmem:[%s11] sm:$0x1]
        %v1321 = vperm.slane %v1319, 0
        %v1339 = vunpack.c.l.b16 %v1303
        %v1340 = vunpack.c.l.b16 %v1304
        %v1341 = vunpack.c.l.b16 %v1305
        %v1342 = vunpack.c.l.b16 %v1306
        %v1343 = vunpack.c.l.b16 %v1307
        %v1344 = vunpack.c.l.b16 %v1308
        %v1345 = vunpack.c.l.b16 %v1309
        %v1346 = vunpack.c.l.b16 %v1310
        %v1347 = vunpack.c.l.b16 %v1311
        %v1348 = vunpack.c.l.b16 %v1312
        %v1349 = vunpack.c.l.b16 %v1313
        %v1350 = vunpack.c.l.b16 %v1314
        %v1351 = vunpack.c.l.b16 %v1315
        %v1352 = vunpack.c.l.b16 %v1316
        %v1353 = vunpack.c.l.b16 %v1317
        %v1354 = vunpack.c.l.b16 %v1318
        %v1355 = vpack.c.b16 %v1340, %v1339
        %v1356 = vpack.c.b16 %v1342, %v1341
        %v1357 = vpack.c.b16 %v1344, %v1343
        %v1358 = vpack.c.b16 %v1346, %v1345
        %v1359 = vpack.c.b16 %v1348, %v1347
        %v1360 = vpack.c.b16 %v1350, %v1349
        %v1361 = vpack.c.b16 %v1352, %v1351
        %v1362 = vpack.c.b16 %v1354, %v1353
        %1371 = vmatpush.bf16.msra.mxu0 %v1362
        %1372 = vmatpush.bf16.msra.mxu0 %v1361
        %1373 = vmatpush.bf16.msra.mxu0 %v1360
        %1374 = vmatpush.bf16.msra.mxu0 %v1359
        %1375 = vmatpush.bf16.msra.mxu0 %v1358
        %1376 = vmatpush.bf16.msra.mxu0 %v1357
        %1377 = vmatpush.bf16.msra.mxu0 %v1356
        %1378 = vmatpush.bf16.msra.mxu0 %v1355
        %1379 = vmatmul.bf16.gmra.mxu0 %v1302
        %v1380 = vpop.f32.mrf.mxu0
        %v1381 = vadd.f32 %v1321, %v1380
        %v1382 = vpop.f32.mrf.mxu0
        %1383 = vdwg.mxu0
        %v1384 = vmul.f32 %v1381, 0.5
        %v1385 = vmul.f32 %v1381, 0.044715
        %v1386 = vmul.f32 %v1385, %v1381
        %v1387 = vmul.f32 %v1386, %v1381
        %v1388 = vadd.f32 %v1381, %v1387
        %v1389 = vmul.f32 %v1388, 0.7978846
        %v1390 = vtanh.pop %v1389
        %v1391 = vadd.f32 %v1390, 1.0
        %v1392 = vmul.f32 %v1384, %v1391
        %v1393 = vpack.c.bf16 %v1392, %v1392
        %v1394 = vld [vmem:[#allocation16] sm:$0xf]
        %v1395 = vld [vmem:[#allocation16 + $0x4] sm:$0xf]
        %v1396 = vld [vmem:[#allocation16 + $0x8] sm:$0xf]
        %v1397 = vld [vmem:[#allocation16 + $0xc] sm:$0xf]
        %v1398 = vld [vmem:[#allocation16 + $0x10] sm:$0xf]
        %v1399 = vld [vmem:[#allocation16 + $0x14] sm:$0xf]
        %v1400 = vld [vmem:[#allocation16 + $0x18] sm:$0xf]
        %v1401 = vld [vmem:[#allocation16 + $0x1c] sm:$0xf]
        %v1402 = vld [vmem:[#allocation16 + $0x20] sm:$0xf]
        %v1403 = vld [vmem:[#allocation16 + $0x24] sm:$0xf]
        %v1404 = vld [vmem:[#allocation16 + $0x28] sm:$0xf]
        %v1405 = vld [vmem:[#allocation16 + $0x2c] sm:$0xf]
        %v1406 = vld [vmem:[#allocation16 + $0x30] sm:$0xf]
        %v1407 = vld [vmem:[#allocation16 + $0x34] sm:$0xf]
        %v1408 = vld [vmem:[#allocation16 + $0x38] sm:$0xf]
        %v1409 = vld [vmem:[#allocation16 + $0x3c] sm:$0xf]
        %v1410 = vld [vmem:[%s13] sm:$0x1]
        %v1412 = vperm.slane %v1410, 0
        %v1430 = vunpack.c.l.b16 %v1394
        %v1431 = vunpack.c.l.b16 %v1395
        %v1432 = vunpack.c.l.b16 %v1396
        %v1433 = vunpack.c.l.b16 %v1397
        %v1434 = vunpack.c.l.b16 %v1398
        %v1435 = vunpack.c.l.b16 %v1399
        %v1436 = vunpack.c.l.b16 %v1400
        %v1437 = vunpack.c.l.b16 %v1401
        %v1438 = vunpack.c.l.b16 %v1402
        %v1439 = vunpack.c.l.b16 %v1403
        %v1440 = vunpack.c.l.b16 %v1404
        %v1441 = vunpack.c.l.b16 %v1405
        %v1442 = vunpack.c.l.b16 %v1406
        %v1443 = vunpack.c.l.b16 %v1407
        %v1444 = vunpack.c.l.b16 %v1408
        %v1445 = vunpack.c.l.b16 %v1409
        %v1446 = vpack.c.b16 %v1431, %v1430
        %v1447 = vpack.c.b16 %v1433, %v1432
        %v1448 = vpack.c.b16 %v1435, %v1434
        %v1449 = vpack.c.b16 %v1437, %v1436
        %v1450 = vpack.c.b16 %v1439, %v1438
        %v1451 = vpack.c.b16 %v1441, %v1440
        %v1452 = vpack.c.b16 %v1443, %v1442
        %v1453 = vpack.c.b16 %v1445, %v1444
        %1462 = vmatpush.bf16.msra.mxu0 %v1453
        %1463 = vmatpush.bf16.msra.mxu0 %v1452
        %1464 = vmatpush.bf16.msra.mxu0 %v1451
        %1465 = vmatpush.bf16.msra.mxu0 %v1450
        %1466 = vmatpush.bf16.msra.mxu0 %v1449
        %1467 = vmatpush.bf16.msra.mxu0 %v1448
        %1468 = vmatpush.bf16.msra.mxu0 %v1447
        %1469 = vmatpush.bf16.msra.mxu0 %v1446
        %1470 = vmatmul.bf16.gmra.mxu0 %v1393
        %v1471 = vpop.f32.mrf.mxu0
        %v1472 = vadd.f32 %v1412, %v1471
        %v1473 = vpop.f32.mrf.mxu0
        %1474 = vdwg.mxu0
        %v1475 = vadd.f32 %v1472, %v1301
        %v1476 = vld [vmem:[%s14] sm:$0x1]
        %v1477 = vld [vmem:[%s15] sm:$0x1]
        %1478 = vadd.xlane.f32.xlu0 %v1475
        %v1479 = vpop.xlane.xlu0 %1478
        %v1480 = vmul.f32 %v1479, 0.03125
        %v1481 = vmul.f32 %v1475, %v1475
        %1482 = vadd.xlane.f32.xlu0 %v1481
        %v1483 = vpop.xlane.xlu0 %1482
        %v1484 = vmul.f32 %v1483, 0.03125
        %v1485 = vmul.f32 %v1480, %v1480
        %v1486 = vsub.f32 %v1484, %v1485
        %v1487 = vsub.f32 %v1475, %v1480
        %v1488 = vadd.f32 %v1486, 1e-12
        %v1489 = vrsqrt.pop %v1488
        %v1490 = vmul.f32 %v1489, %v1488
        %v1491 = vmul.f32 %v1490, %v1489
        %v1492 = vmul.f32 0.5, %v1491
        %v1493 = vsub.f32 1.5, %v1492
        %v1494 = vmul.f32 %v1489, %v1493
        %vm1495 = vweird.f32 %v1488
        %vm1496 = vweird.f32 %v1489
        %vm1497 = vmor %vm1495, %vm1496
        %v1498 = vsel %vm1497, %v1489, %v1494
        %v1499 = vmul.f32 %v1487, %v1498
        %v1501 = vperm.slane %v1476, 0
        %v1503 = vmul.f32 %v1499, %v1501
        %v1505 = vperm.slane %v1477, 0
        %v1507 = vadd.f32 %v1503, %v1505
        %1508 = vst [vmem:[%s688] sm:$0xff] %v1507
        %v1509 = vpack.c.bf16 %v1507, %v1507
        %s1510 = scalar_lea.vmem [#allocation10], 192
        %v1511 = vld [vmem:[%s1510] sm:$0xff]
        %v1512 = vld [vmem:[%s1510 + $0x8] sm:$0xf]
        %v1513 = vld [vmem:[%s1510 + $0xc] sm:$0xff]
        %v1514 = vld [vmem:[%s1510 + $0x14] sm:$0xf]
        %v1515 = vld [vmem:[%s1510 + $0x18] sm:$0xff]
        %v1516 = vld [vmem:[%s1510 + $0x20] sm:$0xf]
        %v1517 = vld [vmem:[%s1510 + $0x24] sm:$0xff]
        %v1518 = vld [vmem:[%s1510 + $0x2c] sm:$0xf]
        %v1519 = vld [vmem:[%s1510 + $0x30] sm:$0xff]
        %v1520 = vld [vmem:[%s1510 + $0x38] sm:$0xf]
        %v1521 = vld [vmem:[%s1510 + $0x3c] sm:$0xff]
        %v1522 = vld [vmem:[%s1510 + $0x44] sm:$0xf]
        %v1523 = vld [vmem:[%s1510 + $0x48] sm:$0xff]
        %v1524 = vld [vmem:[%s1510 + $0x50] sm:$0xf]
        %v1525 = vld [vmem:[%s1510 + $0x54] sm:$0xff]
        %v1526 = vld [vmem:[%s1510 + $0x5c] sm:$0xf]
        %v1527 = vld [vmem:[%s1510 + $0x60] sm:$0xff]
        %v1528 = vld [vmem:[%s1510 + $0x68] sm:$0xf]
        %v1529 = vld [vmem:[%s1510 + $0x6c] sm:$0xff]
        %v1530 = vld [vmem:[%s1510 + $0x74] sm:$0xf]
        %v1531 = vld [vmem:[%s1510 + $0x78] sm:$0xff]
        %v1532 = vld [vmem:[%s1510 + $0x80] sm:$0xf]
        %v1533 = vld [vmem:[%s1510 + $0x84] sm:$0xff]
        %v1534 = vld [vmem:[%s1510 + $0x8c] sm:$0xf]
        %v1535 = vld [vmem:[%s1510 + $0x90] sm:$0xff]
        %v1536 = vld [vmem:[%s1510 + $0x98] sm:$0xf]
        %v1537 = vld [vmem:[%s1510 + $0x9c] sm:$0xff]
        %v1538 = vld [vmem:[%s1510 + $0xa4] sm:$0xf]
        %v1539 = vld [vmem:[%s1510 + $0xa8] sm:$0xff]
        %v1540 = vld [vmem:[%s1510 + $0xb0] sm:$0xf]
        %v1541 = vld [vmem:[%s1510 + $0xb4] sm:$0xff]
        %v1542 = vld [vmem:[%s1510 + $0xbc] sm:$0xf]
        %s1543 = scalar_lea.vmem [#allocation11], 3
        %v1544 = vld [vmem:[%s1543] sm:$0x7]
        %v1546 = vperm.slane %v1544, 0
        %v1547 = vperm.slane %v1544, 1
        %v1548 = vperm.slane %v1544, 2
        %v1584 = vunpack.c.l.b16 %v1511
        %v1585 = vunpack.c.h.b16 %v1511
        %v1586 = vunpack.c.l.b16 %v1512
        %v1587 = vunpack.c.l.b16 %v1513
        %v1588 = vunpack.c.h.b16 %v1513
        %v1589 = vunpack.c.l.b16 %v1514
        %v1590 = vunpack.c.l.b16 %v1515
        %v1591 = vunpack.c.h.b16 %v1515
        %v1592 = vunpack.c.l.b16 %v1516
        %v1593 = vunpack.c.l.b16 %v1517
        %v1594 = vunpack.c.h.b16 %v1517
        %v1595 = vunpack.c.l.b16 %v1518
        %v1596 = vunpack.c.l.b16 %v1519
        %v1597 = vunpack.c.h.b16 %v1519
        %v1598 = vunpack.c.l.b16 %v1520
        %v1599 = vunpack.c.l.b16 %v1521
        %v1600 = vunpack.c.h.b16 %v1521
        %v1601 = vunpack.c.l.b16 %v1522
        %v1602 = vunpack.c.l.b16 %v1523
        %v1603 = vunpack.c.h.b16 %v1523
        %v1604 = vunpack.c.l.b16 %v1524
        %v1605 = vunpack.c.l.b16 %v1525
        %v1606 = vunpack.c.h.b16 %v1525
        %v1607 = vunpack.c.l.b16 %v1526
        %v1608 = vunpack.c.l.b16 %v1527
        %v1609 = vunpack.c.h.b16 %v1527
        %v1610 = vunpack.c.l.b16 %v1528
        %v1611 = vunpack.c.l.b16 %v1529
        %v1612 = vunpack.c.h.b16 %v1529
        %v1613 = vunpack.c.l.b16 %v1530
        %v1614 = vunpack.c.l.b16 %v1531
        %v1615 = vunpack.c.h.b16 %v1531
        %v1616 = vunpack.c.l.b16 %v1532
        %v1617 = vunpack.c.l.b16 %v1533
        %v1618 = vunpack.c.h.b16 %v1533
        %v1619 = vunpack.c.l.b16 %v1534
        %v1620 = vunpack.c.l.b16 %v1535
        %v1621 = vunpack.c.h.b16 %v1535
        %v1622 = vunpack.c.l.b16 %v1536
        %v1623 = vunpack.c.l.b16 %v1537
        %v1624 = vunpack.c.h.b16 %v1537
        %v1625 = vunpack.c.l.b16 %v1538
        %v1626 = vunpack.c.l.b16 %v1539
        %v1627 = vunpack.c.h.b16 %v1539
        %v1628 = vunpack.c.l.b16 %v1540
        %v1629 = vunpack.c.l.b16 %v1541
        %v1630 = vunpack.c.h.b16 %v1541
        %v1631 = vunpack.c.l.b16 %v1542
        %v1632 = vpack.c.b16 %v1587, %v1584
        %v1633 = vpack.c.b16 %v1588, %v1585
        %v1634 = vpack.c.b16 %v1589, %v1586
        %v1635 = vpack.c.b16 %v1593, %v1590
        %v1636 = vpack.c.b16 %v1594, %v1591
        %v1637 = vpack.c.b16 %v1595, %v1592
        %v1638 = vpack.c.b16 %v1599, %v1596
        %v1639 = vpack.c.b16 %v1600, %v1597
        %v1640 = vpack.c.b16 %v1601, %v1598
        %v1641 = vpack.c.b16 %v1605, %v1602
        %v1642 = vpack.c.b16 %v1606, %v1603
        %v1643 = vpack.c.b16 %v1607, %v1604
        %v1644 = vpack.c.b16 %v1611, %v1608
        %v1645 = vpack.c.b16 %v1612, %v1609
        %v1646 = vpack.c.b16 %v1613, %v1610
        %v1647 = vpack.c.b16 %v1617, %v1614
        %v1648 = vpack.c.b16 %v1618, %v1615
        %v1649 = vpack.c.b16 %v1619, %v1616
        %v1650 = vpack.c.b16 %v1623, %v1620
        %v1651 = vpack.c.b16 %v1624, %v1621
        %v1652 = vpack.c.b16 %v1625, %v1622
        %v1653 = vpack.c.b16 %v1629, %v1626
        %v1654 = vpack.c.b16 %v1630, %v1627
        %v1655 = vpack.c.b16 %v1631, %v1628
        %1680 = vmatpush.bf16.msra.mxu0 %v1653
        %1681 = vmatpush.bf16.msra.mxu0 %v1650
        %1682 = vmatpush.bf16.msra.mxu0 %v1647
        %1683 = vmatpush.bf16.msra.mxu0 %v1644
        %1684 = vmatpush.bf16.msra.mxu0 %v1641
        %1685 = vmatpush.bf16.msra.mxu0 %v1638
        %1686 = vmatpush.bf16.msra.mxu0 %v1635
        %1687 = vmatpush.bf16.msra.mxu0 %v1632
        %1688 = vmatmul.bf16.gmra.mxu0 %v1509
        %v1689 = vpop.f32.mrf.mxu0
        %v1690 = vadd.f32 %v1546, %v1689
        %v1691 = vpop.f32.mrf.mxu0
        %1692 = vdwg.mxu0
        %1693 = vmatpush.bf16.msra.mxu0 %v1654
        %1694 = vmatpush.bf16.msra.mxu0 %v1651
        %1695 = vmatpush.bf16.msra.mxu0 %v1648
        %1696 = vmatpush.bf16.msra.mxu0 %v1645
        %1697 = vmatpush.bf16.msra.mxu0 %v1642
        %1698 = vmatpush.bf16.msra.mxu0 %v1639
        %1699 = vmatpush.bf16.msra.mxu0 %v1636
        %1700 = vmatpush.bf16.msra.mxu0 %v1633
        %1701 = vmatmul.bf16.gmra.mxu0 %v1509
        %v1702 = vpop.f32.mrf.mxu0
        %v1703 = vadd.f32 %v1547, %v1702
        %v1704 = vpop.f32.mrf.mxu0
        %1705 = vdwg.mxu0
        %1706 = vmatpush.bf16.msra.mxu0 %v1655
        %1707 = vmatpush.bf16.msra.mxu0 %v1652
        %1708 = vmatpush.bf16.msra.mxu0 %v1649
        %1709 = vmatpush.bf16.msra.mxu0 %v1646
        %1710 = vmatpush.bf16.msra.mxu0 %v1643
        %1711 = vmatpush.bf16.msra.mxu0 %v1640
        %1712 = vmatpush.bf16.msra.mxu0 %v1637
        %1713 = vmatpush.bf16.msra.mxu0 %v1634
        %1714 = vmatmul.bf16.gmra.mxu0 %v1509
        %v1715 = vpop.f32.mrf.mxu0
        %v1716 = vadd.f32 %v1548, %v1715
        %v1717 = vpop.f32.mrf.mxu0
        %1718 = vdwg.mxu0
        %1720 = vrot.lane.b32.xlu0 %v1690, 120
        %v1721 = vpop.permute.xlu0 %1720
        %1723 = vrot.lane.b32.xlu0 %v1690, 112
        %v1724 = vpop.permute.xlu0 %1723
        %1726 = vrot.lane.b32.xlu0 %v1690, 104
        %v1727 = vpop.permute.xlu0 %1726
        %v1729 = vpack.c.bf16 %v1690, %v1690
        %v1730 = vpack.c.bf16 %v1721, %v1721
        %v1731 = vpack.c.bf16 %v1724, %v1724
        %v1732 = vpack.c.bf16 %v1727, %v1727
        %1734 = vrot.lane.b32.xlu0 %v1703, 120
        %v1735 = vpop.permute.xlu0 %1734
        %1737 = vrot.lane.b32.xlu0 %v1703, 112
        %v1738 = vpop.permute.xlu0 %1737
        %1740 = vrot.lane.b32.xlu0 %v1703, 104
        %v1741 = vpop.permute.xlu0 %1740
        %v1743 = vpack.c.bf16 %v1703, %v1703
        %v1744 = vpack.c.bf16 %v1735, %v1735
        %v1745 = vpack.c.bf16 %v1738, %v1738
        %v1746 = vpack.c.bf16 %v1741, %v1741
        %1748 = vrot.lane.b32.xlu0 %v1716, 120
        %v1749 = vpop.permute.xlu0 %1748
        %1751 = vrot.lane.b32.xlu0 %v1716, 112
        %v1752 = vpop.permute.xlu0 %1751
        %1754 = vrot.lane.b32.xlu0 %v1716, 104
        %v1755 = vpop.permute.xlu0 %1754
        %v1757 = vpack.c.bf16 %v1716, %v1716
        %v1758 = vpack.c.bf16 %v1749, %v1749
        %v1759 = vpack.c.bf16 %v1752, %v1752
        %v1760 = vpack.c.bf16 %v1755, %v1755
        %v1762 = vsel %vm975, %v1729, 0
        %v1765 = vsel %vm975, %v1743, 0
        %1767 = vmatpush.bf16.xpose.msra.mxu0 0
        %1768 = vmatpush.bf16.xpose.msra.mxu0 0
        %1769 = vmatpush.bf16.xpose.msra.mxu0 0
        %1770 = vmatpush.bf16.xpose.msra.mxu0 0
        %1771 = vmatpush.bf16.xpose.msra.mxu0 0
        %1772 = vmatpush.bf16.xpose.msra.mxu0 0
        %1773 = vmatpush.bf16.xpose.msra.mxu0 0
        %1774 = vmatpush.bf16.xpose.msra.mxu0 %v1765
        %1775 = vmatmul.bf16.gmra.mxu0 %v1762
        %v1776 = vpop.f32.mrf.mxu0
        %v1777 = vadd.f32 %v691, %v1776
        %v1778 = vpop.f32.mrf.mxu0
        %1779 = vdwg.mxu0
        %v1781 = vsel %vm975, %v1730, 0
        %v1784 = vsel %vm975, %v1744, 0
        %1786 = vmatpush.bf16.xpose.msra.mxu0 0
        %1787 = vmatpush.bf16.xpose.msra.mxu0 0
        %1788 = vmatpush.bf16.xpose.msra.mxu0 0
        %1789 = vmatpush.bf16.xpose.msra.mxu0 0
        %1790 = vmatpush.bf16.xpose.msra.mxu0 0
        %1791 = vmatpush.bf16.xpose.msra.mxu0 0
        %1792 = vmatpush.bf16.xpose.msra.mxu0 0
        %1793 = vmatpush.bf16.xpose.msra.mxu0 %v1784
        %1794 = vmatmul.bf16.gmra.mxu0 %v1781
        %v1795 = vpop.f32.mrf.mxu0
        %v1796 = vadd.f32 %v691, %v1795
        %v1797 = vpop.f32.mrf.mxu0
        %1798 = vdwg.mxu0
        %v1800 = vsel %vm975, %v1731, 0
        %v1803 = vsel %vm975, %v1745, 0
        %1805 = vmatpush.bf16.xpose.msra.mxu0 0
        %1806 = vmatpush.bf16.xpose.msra.mxu0 0
        %1807 = vmatpush.bf16.xpose.msra.mxu0 0
        %1808 = vmatpush.bf16.xpose.msra.mxu0 0
        %1809 = vmatpush.bf16.xpose.msra.mxu0 0
        %1810 = vmatpush.bf16.xpose.msra.mxu0 0
        %1811 = vmatpush.bf16.xpose.msra.mxu0 0
        %1812 = vmatpush.bf16.xpose.msra.mxu0 %v1803
        %1813 = vmatmul.bf16.gmra.mxu0 %v1800
        %v1814 = vpop.f32.mrf.mxu0
        %v1815 = vadd.f32 %v691, %v1814
        %v1816 = vpop.f32.mrf.mxu0
        %1817 = vdwg.mxu0
        %v1819 = vsel %vm975, %v1732, 0
        %v1822 = vsel %vm975, %v1746, 0
        %1824 = vmatpush.bf16.xpose.msra.mxu0 0
        %1825 = vmatpush.bf16.xpose.msra.mxu0 0
        %1826 = vmatpush.bf16.xpose.msra.mxu0 0
        %1827 = vmatpush.bf16.xpose.msra.mxu0 0
        %1828 = vmatpush.bf16.xpose.msra.mxu0 0
        %1829 = vmatpush.bf16.xpose.msra.mxu0 0
        %1830 = vmatpush.bf16.xpose.msra.mxu0 0
        %1831 = vmatpush.bf16.xpose.msra.mxu0 %v1822
        %1832 = vmatmul.bf16.gmra.mxu0 %v1819
        %v1833 = vpop.f32.mrf.mxu0
        %v1834 = vadd.f32 %v691, %v1833
        %v1835 = vpop.f32.mrf.mxu0
        %1836 = vdwg.mxu0
        %v1837 = vsel %vm975, %v1777, -inf
        %1838 = vmax.xlane.f32.xlu0 %v1837
        %v1839 = vpop.xlane.xlu0 %1838
        %v1840 = vsel %vm975, %v1796, -inf
        %1841 = vmax.xlane.f32.xlu0 %v1840
        %v1842 = vpop.xlane.xlu0 %1841
        %v1843 = vsel %vm975, %v1815, -inf
        %1844 = vmax.xlane.f32.xlu0 %v1843
        %v1845 = vpop.xlane.xlu0 %1844
        %v1846 = vsel %vm975, %v1834, -inf
        %1847 = vmax.xlane.f32.xlu0 %v1846
        %v1848 = vpop.xlane.xlu0 %1847
        %v1849 = vsub.f32 %v1777, %v1839
        %v1850 = vsub.f32 %v1796, %v1842
        %v1851 = vsub.f32 %v1815, %v1845
        %v1852 = vsub.f32 %v1834, %v1848
        %v1853 = vmul.f32 %v1849, 1.442695
        %v1854 = vpow.pop %v1853
        %v1855 = vmul.f32 %v1850, 1.442695
        %v1856 = vpow.pop %v1855
        %v1857 = vmul.f32 %v1851, 1.442695
        %v1858 = vpow.pop %v1857
        %v1859 = vmul.f32 %v1852, 1.442695
        %v1860 = vpow.pop %v1859
        %v1861 = vsel %vm975, %v1854, 0.0
        %1862 = vadd.xlane.f32.xlu0 %v1861
        %v1863 = vpop.xlane.xlu0 %1862
        %v1864 = vsel %vm975, %v1856, 0.0
        %1865 = vadd.xlane.f32.xlu0 %v1864
        %v1866 = vpop.xlane.xlu0 %1865
        %v1867 = vsel %vm975, %v1858, 0.0
        %1868 = vadd.xlane.f32.xlu0 %v1867
        %v1869 = vpop.xlane.xlu0 %1868
        %v1870 = vsel %vm975, %v1860, 0.0
        %1871 = vadd.xlane.f32.xlu0 %v1870
        %v1872 = vpop.xlane.xlu0 %1871
        %v1873 = vrcp.pop %v1863
        %v1874 = vrcp.pop %v1866
        %v1875 = vrcp.pop %v1869
        %v1876 = vrcp.pop %v1872
        %v1877 = vmul.f32 %v1854, %v1873
        %v1878 = vmul.f32 %v1856, %v1874
        %v1879 = vmul.f32 %v1858, %v1875
        %v1880 = vmul.f32 %v1860, %v1876
        %v1881 = vpack.c.bf16 %v1877, %v1877
        %v1882 = vpack.c.bf16 %v1878, %v1878
        %v1883 = vpack.c.bf16 %v1879, %v1879
        %v1884 = vpack.c.bf16 %v1880, %v1880
        %v1886 = vsel %vm975, %v1881, 0
        %v1889 = vsel %vm1103, %v1757, 0
        %1891 = vmatpush.bf16.msra.mxu0 0
        %1892 = vmatpush.bf16.msra.mxu0 0
        %1893 = vmatpush.bf16.msra.mxu0 0
        %1894 = vmatpush.bf16.msra.mxu0 0
        %1895 = vmatpush.bf16.msra.mxu0 0
        %1896 = vmatpush.bf16.msra.mxu0 0
        %1897 = vmatpush.bf16.msra.mxu0 0
        %1898 = vmatpush.bf16.msra.mxu0 %v1889
        %1899 = vmatmul.bf16.gmra.mxu0 %v1886
        %v1900 = vpop.f32.mrf.mxu0
        %v1901 = vadd.f32 0.0, %v1900
        %v1902 = vpop.f32.mrf.mxu0
        %1903 = vdwg.mxu0
        %v1905 = vsel %vm975, %v1882, 0
        %v1908 = vsel %vm1103, %v1758, 0
        %1910 = vmatpush.bf16.msra.mxu0 0
        %1911 = vmatpush.bf16.msra.mxu0 0
        %1912 = vmatpush.bf16.msra.mxu0 0
        %1913 = vmatpush.bf16.msra.mxu0 0
        %1914 = vmatpush.bf16.msra.mxu0 0
        %1915 = vmatpush.bf16.msra.mxu0 0
        %1916 = vmatpush.bf16.msra.mxu0 0
        %1917 = vmatpush.bf16.msra.mxu0 %v1908
        %1918 = vmatmul.bf16.gmra.mxu0 %v1905
        %v1919 = vpop.f32.mrf.mxu0
        %v1920 = vadd.f32 0.0, %v1919
        %v1921 = vpop.f32.mrf.mxu0
        %1922 = vdwg.mxu0
        %v1924 = vsel %vm975, %v1883, 0
        %v1927 = vsel %vm1103, %v1759, 0
        %1929 = vmatpush.bf16.msra.mxu0 0
        %1930 = vmatpush.bf16.msra.mxu0 0
        %1931 = vmatpush.bf16.msra.mxu0 0
        %1932 = vmatpush.bf16.msra.mxu0 0
        %1933 = vmatpush.bf16.msra.mxu0 0
        %1934 = vmatpush.bf16.msra.mxu0 0
        %1935 = vmatpush.bf16.msra.mxu0 0
        %1936 = vmatpush.bf16.msra.mxu0 %v1927
        %1937 = vmatmul.bf16.gmra.mxu0 %v1924
        %v1938 = vpop.f32.mrf.mxu0
        %v1939 = vadd.f32 0.0, %v1938
        %v1940 = vpop.f32.mrf.mxu0
        %1941 = vdwg.mxu0
        %v1943 = vsel %vm975, %v1884, 0
        %v1946 = vsel %vm1103, %v1760, 0
        %1948 = vmatpush.bf16.msra.mxu0 0
        %1949 = vmatpush.bf16.msra.mxu0 0
        %1950 = vmatpush.bf16.msra.mxu0 0
        %1951 = vmatpush.bf16.msra.mxu0 0
        %1952 = vmatpush.bf16.msra.mxu0 0
        %1953 = vmatpush.bf16.msra.mxu0 0
        %1954 = vmatpush.bf16.msra.mxu0 0
        %1955 = vmatpush.bf16.msra.mxu0 %v1946
        %1956 = vmatmul.bf16.gmra.mxu0 %v1943
        %v1957 = vpop.f32.mrf.mxu0
        %v1958 = vadd.f32 0.0, %v1957
        %v1959 = vpop.f32.mrf.mxu0
        %1960 = vdwg.mxu0
        %v1961 = vpack.c.bf16 %v1901, %v1901
        %v1962 = vpack.c.bf16 %v1920, %v1920
        %v1963 = vpack.c.bf16 %v1939, %v1939
        %v1964 = vpack.c.bf16 %v1958, %v1958
        %s1965 = scalar_lea.vmem [#allocation13], 16
        %v1966 = vld [vmem:[%s1965] sm:$0xf]
        %v1967 = vld [vmem:[%s1965 + $0x4] sm:$0xf]
        %v1968 = vld [vmem:[%s1965 + $0x8] sm:$0xf]
        %v1969 = vld [vmem:[%s1965 + $0xc] sm:$0xf]
        %v1971 = vsel %vm975, %v1961, 0
        %v1974 = vsel %vm1103, %v1966, 0
        %1976 = vmatpush.bf16.msra.mxu0 0
        %1977 = vmatpush.bf16.msra.mxu0 0
        %1978 = vmatpush.bf16.msra.mxu0 0
        %1979 = vmatpush.bf16.msra.mxu0 0
        %1980 = vmatpush.bf16.msra.mxu0 0
        %1981 = vmatpush.bf16.msra.mxu0 0
        %1982 = vmatpush.bf16.msra.mxu0 0
        %1983 = vmatpush.bf16.msra.mxu0 %v1974
        %1984 = vmatmul.bf16.gmra.mxu0 %v1971
        %v1985 = vpop.f32.mrf.mxu0
        %v1986 = vadd.f32 0.0, %v1985
        %v1987 = vpop.f32.mrf.mxu0
        %1988 = vdwg.mxu0
        %v1990 = vsel %vm975, %v1962, 0
        %v1993 = vsel %vm1103, %v1967, 0
        %1995 = vmatpush.bf16.msra.mxu0 0
        %1996 = vmatpush.bf16.msra.mxu0 0
        %1997 = vmatpush.bf16.msra.mxu0 0
        %1998 = vmatpush.bf16.msra.mxu0 0
        %1999 = vmatpush.bf16.msra.mxu0 0
        %2000 = vmatpush.bf16.msra.mxu0 0
        %2001 = vmatpush.bf16.msra.mxu0 0
        %2002 = vmatpush.bf16.msra.mxu0 %v1993
        %2003 = vmatmul.bf16.gmra.mxu0 %v1990
        %v2004 = vpop.f32.mrf.mxu0
        %v2005 = vadd.f32 0.0, %v2004
        %v2006 = vpop.f32.mrf.mxu0
        %2007 = vdwg.mxu0
        %v2009 = vsel %vm975, %v1963, 0
        %v2012 = vsel %vm1103, %v1968, 0
        %2014 = vmatpush.bf16.msra.mxu0 0
        %2015 = vmatpush.bf16.msra.mxu0 0
        %2016 = vmatpush.bf16.msra.mxu0 0
        %2017 = vmatpush.bf16.msra.mxu0 0
        %2018 = vmatpush.bf16.msra.mxu0 0
        %2019 = vmatpush.bf16.msra.mxu0 0
        %2020 = vmatpush.bf16.msra.mxu0 0
        %2021 = vmatpush.bf16.msra.mxu0 %v2012
        %2022 = vmatmul.bf16.gmra.mxu0 %v2009
        %v2023 = vpop.f32.mrf.mxu0
        %v2024 = vadd.f32 0.0, %v2023
        %v2025 = vpop.f32.mrf.mxu0
        %2026 = vdwg.mxu0
        %v2028 = vsel %vm975, %v1964, 0
        %v2031 = vsel %vm1103, %v1969, 0
        %2033 = vmatpush.bf16.msra.mxu0 0
        %2034 = vmatpush.bf16.msra.mxu0 0
        %2035 = vmatpush.bf16.msra.mxu0 0
        %2036 = vmatpush.bf16.msra.mxu0 0
        %2037 = vmatpush.bf16.msra.mxu0 0
        %2038 = vmatpush.bf16.msra.mxu0 0
        %2039 = vmatpush.bf16.msra.mxu0 0
        %2040 = vmatpush.bf16.msra.mxu0 %v2031
        %2041 = vmatmul.bf16.gmra.mxu0 %v2028
        %v2042 = vpop.f32.mrf.mxu0
        %v2043 = vadd.f32 0.0, %v2042
        %v2044 = vpop.f32.mrf.mxu0
        %2045 = vdwg.mxu0
        %v2046 = vadd.f32 %v1986, %v2005
        %v2047 = vadd.f32 %v2046, %v2024
        %v2048 = vadd.f32 %v2047, %v2043
        %s2049 = scalar_lea.vmem %s7, 1
        %v2050 = vld [vmem:[%s2049] sm:$0x1]
        %v2052 = vperm.slane %v2050, 0
        %v2054 = vadd.f32 %v2048, %v2052
        %v2055 = vadd.f32 %v2054, %v1507
        %s2056 = scalar_lea.vmem %s8, 1
        %v2057 = vld [vmem:[%s2056] sm:$0x1]
        %s2058 = scalar_lea.vmem %s9, 1
        %v2059 = vld [vmem:[%s2058] sm:$0x1]
        %2060 = vadd.xlane.f32.xlu0 %v2055
        %v2061 = vpop.xlane.xlu0 %2060
        %v2062 = vmul.f32 %v2061, 0.03125
        %v2063 = vmul.f32 %v2055, %v2055
        %2064 = vadd.xlane.f32.xlu0 %v2063
        %v2065 = vpop.xlane.xlu0 %2064
        %v2066 = vmul.f32 %v2065, 0.03125
        %v2067 = vmul.f32 %v2062, %v2062
        %v2068 = vsub.f32 %v2066, %v2067
        %v2069 = vsub.f32 %v2055, %v2062
        %v2070 = vadd.f32 %v2068, 1e-12
        %v2071 = vrsqrt.pop %v2070
        %v2072 = vmul.f32 %v2071, %v2070
        %v2073 = vmul.f32 %v2072, %v2071
        %v2074 = vmul.f32 0.5, %v2073
        %v2075 = vsub.f32 1.5, %v2074
        %v2076 = vmul.f32 %v2071, %v2075
        %vm2077 = vweird.f32 %v2070
        %vm2078 = vweird.f32 %v2071
        %vm2079 = vmor %vm2077, %vm2078
        %v2080 = vsel %vm2079, %v2071, %v2076
        %v2081 = vmul.f32 %v2069, %v2080
        %v2083 = vperm.slane %v2057, 0
        %v2085 = vmul.f32 %v2081, %v2083
        %v2087 = vperm.slane %v2059, 0
        %v2089 = vadd.f32 %v2085, %v2087
        %v2090 = vpack.c.bf16 %v2089, %v2089
        %s2091 = scalar_lea.vmem [#allocation14], 64
        %v2092 = vld [vmem:[%s2091] sm:$0xf]
        %v2093 = vld [vmem:[%s2091 + $0x4] sm:$0xf]
        %v2094 = vld [vmem:[%s2091 + $0x8] sm:$0xf]
        %v2095 = vld [vmem:[%s2091 + $0xc] sm:$0xf]
        %v2096 = vld [vmem:[%s2091 + $0x10] sm:$0xf]
        %v2097 = vld [vmem:[%s2091 + $0x14] sm:$0xf]
        %v2098 = vld [vmem:[%s2091 + $0x18] sm:$0xf]
        %v2099 = vld [vmem:[%s2091 + $0x1c] sm:$0xf]
        %v2100 = vld [vmem:[%s2091 + $0x20] sm:$0xf]
        %v2101 = vld [vmem:[%s2091 + $0x24] sm:$0xf]
        %v2102 = vld [vmem:[%s2091 + $0x28] sm:$0xf]
        %v2103 = vld [vmem:[%s2091 + $0x2c] sm:$0xf]
        %v2104 = vld [vmem:[%s2091 + $0x30] sm:$0xf]
        %v2105 = vld [vmem:[%s2091 + $0x34] sm:$0xf]
        %v2106 = vld [vmem:[%s2091 + $0x38] sm:$0xf]
        %v2107 = vld [vmem:[%s2091 + $0x3c] sm:$0xf]
        %s2108 = scalar_lea.vmem %s11, 1
        %v2109 = vld [vmem:[%s2108] sm:$0x1]
        %v2111 = vperm.slane %v2109, 0
        %v2129 = vunpack.c.l.b16 %v2092
        %v2130 = vunpack.c.l.b16 %v2093
        %v2131 = vunpack.c.l.b16 %v2094
        %v2132 = vunpack.c.l.b16 %v2095
        %v2133 = vunpack.c.l.b16 %v2096
        %v2134 = vunpack.c.l.b16 %v2097
        %v2135 = vunpack.c.l.b16 %v2098
        %v2136 = vunpack.c.l.b16 %v2099
        %v2137 = vunpack.c.l.b16 %v2100
        %v2138 = vunpack.c.l.b16 %v2101
        %v2139 = vunpack.c.l.b16 %v2102
        %v2140 = vunpack.c.l.b16 %v2103
        %v2141 = vunpack.c.l.b16 %v2104
        %v2142 = vunpack.c.l.b16 %v2105
        %v2143 = vunpack.c.l.b16 %v2106
        %v2144 = vunpack.c.l.b16 %v2107
        %v2145 = vpack.c.b16 %v2130, %v2129
        %v2146 = vpack.c.b16 %v2132, %v2131
        %v2147 = vpack.c.b16 %v2134, %v2133
        %v2148 = vpack.c.b16 %v2136, %v2135
        %v2149 = vpack.c.b16 %v2138, %v2137
        %v2150 = vpack.c.b16 %v2140, %v2139
        %v2151 = vpack.c.b16 %v2142, %v2141
        %v2152 = vpack.c.b16 %v2144, %v2143
        %2161 = vmatpush.bf16.msra.mxu0 %v2152
        %2162 = vmatpush.bf16.msra.mxu0 %v2151
        %2163 = vmatpush.bf16.msra.mxu0 %v2150
        %2164 = vmatpush.bf16.msra.mxu0 %v2149
        %2165 = vmatpush.bf16.msra.mxu0 %v2148
        %2166 = vmatpush.bf16.msra.mxu0 %v2147
        %2167 = vmatpush.bf16.msra.mxu0 %v2146
        %2168 = vmatpush.bf16.msra.mxu0 %v2145
        %2169 = vmatmul.bf16.gmra.mxu0 %v2090
        %v2170 = vpop.f32.mrf.mxu0
        %v2171 = vadd.f32 %v2111, %v2170
        %v2172 = vpop.f32.mrf.mxu0
        %2173 = vdwg.mxu0
        %v2174 = vmul.f32 %v2171, 0.5
        %v2175 = vmul.f32 %v2171, 0.044715
        %v2176 = vmul.f32 %v2175, %v2171
        %v2177 = vmul.f32 %v2176, %v2171
        %v2178 = vadd.f32 %v2171, %v2177
        %v2179 = vmul.f32 %v2178, 0.7978846
        %v2180 = vtanh.pop %v2179
        %v2181 = vadd.f32 %v2180, 1.0
        %v2182 = vmul.f32 %v2174, %v2181
        %v2183 = vpack.c.bf16 %v2182, %v2182
        %s2184 = scalar_lea.vmem [#allocation16], 64
        %v2185 = vld [vmem:[%s2184] sm:$0xf]
        %v2186 = vld [vmem:[%s2184 + $0x4] sm:$0xf]
        %v2187 = vld [vmem:[%s2184 + $0x8] sm:$0xf]
        %v2188 = vld [vmem:[%s2184 + $0xc] sm:$0xf]
        %v2189 = vld [vmem:[%s2184 + $0x10] sm:$0xf]
        %v2190 = vld [vmem:[%s2184 + $0x14] sm:$0xf]
        %v2191 = vld [vmem:[%s2184 + $0x18] sm:$0xf]
        %v2192 = vld [vmem:[%s2184 + $0x1c] sm:$0xf]
        %v2193 = vld [vmem:[%s2184 + $0x20] sm:$0xf]
        %v2194 = vld [vmem:[%s2184 + $0x24] sm:$0xf]
        %v2195 = vld [vmem:[%s2184 + $0x28] sm:$0xf]
        %v2196 = vld [vmem:[%s2184 + $0x2c] sm:$0xf]
        %v2197 = vld [vmem:[%s2184 + $0x30] sm:$0xf]
        %v2198 = vld [vmem:[%s2184 + $0x34] sm:$0xf]
        %v2199 = vld [vmem:[%s2184 + $0x38] sm:$0xf]
        %v2200 = vld [vmem:[%s2184 + $0x3c] sm:$0xf]
        %s2201 = scalar_lea.vmem %s13, 1
        %v2202 = vld [vmem:[%s2201] sm:$0x1]
        %v2204 = vperm.slane %v2202, 0
        %v2222 = vunpack.c.l.b16 %v2185
        %v2223 = vunpack.c.l.b16 %v2186
        %v2224 = vunpack.c.l.b16 %v2187
        %v2225 = vunpack.c.l.b16 %v2188
        %v2226 = vunpack.c.l.b16 %v2189
        %v2227 = vunpack.c.l.b16 %v2190
        %v2228 = vunpack.c.l.b16 %v2191
        %v2229 = vunpack.c.l.b16 %v2192
        %v2230 = vunpack.c.l.b16 %v2193
        %v2231 = vunpack.c.l.b16 %v2194
        %v2232 = vunpack.c.l.b16 %v2195
        %v2233 = vunpack.c.l.b16 %v2196
        %v2234 = vunpack.c.l.b16 %v2197
        %v2235 = vunpack.c.l.b16 %v2198
        %v2236 = vunpack.c.l.b16 %v2199
        %v2237 = vunpack.c.l.b16 %v2200
        %v2238 = vpack.c.b16 %v2223, %v2222
        %v2239 = vpack.c.b16 %v2225, %v2224
        %v2240 = vpack.c.b16 %v2227, %v2226
        %v2241 = vpack.c.b16 %v2229, %v2228
        %v2242 = vpack.c.b16 %v2231, %v2230
        %v2243 = vpack.c.b16 %v2233, %v2232
        %v2244 = vpack.c.b16 %v2235, %v2234
        %v2245 = vpack.c.b16 %v2237, %v2236
        %2254 = vmatpush.bf16.msra.mxu0 %v2245
        %2255 = vmatpush.bf16.msra.mxu0 %v2244
        %2256 = vmatpush.bf16.msra.mxu0 %v2243
        %2257 = vmatpush.bf16.msra.mxu0 %v2242
        %2258 = vmatpush.bf16.msra.mxu0 %v2241
        %2259 = vmatpush.bf16.msra.mxu0 %v2240
        %2260 = vmatpush.bf16.msra.mxu0 %v2239
        %2261 = vmatpush.bf16.msra.mxu0 %v2238
        %2262 = vmatmul.bf16.gmra.mxu0 %v2183
        %v2263 = vpop.f32.mrf.mxu0
        %v2264 = vadd.f32 %v2204, %v2263
        %v2265 = vpop.f32.mrf.mxu0
        %2266 = vdwg.mxu0
        %v2267 = vadd.f32 %v2264, %v2089
        %s2268 = scalar_lea.vmem %s14, 1
        %v2269 = vld [vmem:[%s2268] sm:$0x1]
        %s2270 = scalar_lea.vmem %s15, 1
        %v2271 = vld [vmem:[%s2270] sm:$0x1]
        %2272 = vadd.xlane.f32.xlu0 %v2267
        %v2273 = vpop.xlane.xlu0 %2272
        %v2274 = vmul.f32 %v2273, 0.03125
        %v2275 = vmul.f32 %v2267, %v2267
        %2276 = vadd.xlane.f32.xlu0 %v2275
        %v2277 = vpop.xlane.xlu0 %2276
        %v2278 = vmul.f32 %v2277, 0.03125
        %v2279 = vmul.f32 %v2274, %v2274
        %v2280 = vsub.f32 %v2278, %v2279
        %v2281 = vsub.f32 %v2267, %v2274
        %v2282 = vadd.f32 %v2280, 1e-12
        %v2283 = vrsqrt.pop %v2282
        %v2284 = vmul.f32 %v2283, %v2282
        %v2285 = vmul.f32 %v2284, %v2283
        %v2286 = vmul.f32 0.5, %v2285
        %v2287 = vsub.f32 1.5, %v2286
        %v2288 = vmul.f32 %v2283, %v2287
        %vm2289 = vweird.f32 %v2282
        %vm2290 = vweird.f32 %v2283
        %vm2291 = vmor %vm2289, %vm2290
        %v2292 = vsel %vm2291, %v2283, %v2288
        %v2293 = vmul.f32 %v2281, %v2292
        %v2295 = vperm.slane %v2269, 0
        %v2297 = vmul.f32 %v2293, %v2295
        %v2299 = vperm.slane %v2271, 0
        %v2301 = vadd.f32 %v2297, %v2299
        %s2302 = scalar_lea.vmem %s688, 8 [#allocation17]
        %2303 = vst [vmem:[%s2302] sm:$0xff] %v2301
        %s2304 = sand.u32 %s393, 1
        %s2305 = scalar_lea.sflag [#allocation4], %s2304
        %s2306 = sand.u32 %s393, 1
        %s2307 = smul.addr %s2306, 16
        %s2308 = scalar_lea.vmem [#allocation17], %s2307
        // Predicated region
        $region121: #{tpu_custom_call.1} parent=83 // pred_check
          %p2309 = pneg %p403
        $region122: #{tpu_custom_call.1} parent=83 // pred_check_branch
          %2311 = sbr.rel (%p2309) target = $region124
        $region123: #{tpu_custom_call.1} parent=83 // pred_region
          %2313 = vsyncadd %s2305, 0
          %s2314 = smul.addr %s39, 8
          %s2315 = scalar_lea.hbm %s16, %s2314
          %s2316 = sshll.u32 %s2308, 4
          %s2317 = int_to_ptr.vmem [resolvable:$true] %s2316
          %s2318 = sshll.u32 %s2315, 4
          %s2319 = int_to_ptr.hbm [resolvable:$true] %s2318
          %2324 = dma.vmem_to_hbm [thread:$0]  %s2317, 256, %s2319, %s2305, 128, 256, 8
        $region124: #{tpu_custom_call.1} parent=83 // pred_fallthru
          _
      $region84: #{tpu_custom_call.1} parent=5 // pred_fallthru
        _
      %p2325 = scmp.le.s32.totalorder 2, %s34
      // Predicated region
      $region125: #{tpu_custom_call.1} parent=5 // pred_check
        %p2326 = pneg %p2325
      $region126: #{tpu_custom_call.1} parent=5 // pred_check_branch
        %2328 = sbr.rel (%p2326) target = $region128
      $region127: #{tpu_custom_call.1} parent=5 // pred_region
        %s2329 = ssub.s32 %s34, 2
        // Predicated region
        $region129: #{tpu_custom_call.1} parent=127 // pred_check
          %p2330 = pneg %p409
        $region130: #{tpu_custom_call.1} parent=127 // pred_check_branch
          %2332 = sbr.rel (%p2330) target = $region132
        $region131: #{tpu_custom_call.1} parent=127 // pred_region
          %s2333 = sand.u32 %s394, 1
          %s2334 = scalar_lea.sflag [#allocation4], %s2333
          %s2335 = sand.u32 %s394, 1
          %s2336 = smul.addr %s2335, 16
          %s2337 = scalar_lea.vmem [#allocation17], %s2336
          %2339 = dma.done %s2334, 256
        $region132: #{tpu_custom_call.1} parent=127 // pred_fallthru
          _
      $region128: #{tpu_custom_call.1} parent=5 // pred_fallthru
        _
    $region6: #{tpu_custom_call.1} parent=1 // loop_footer
      %s38 = sadd.s32 1, %s34
    $region7: #{tpu_custom_call.1} parent=1 // loop_footer_branch
      %33 = sbr.rel target = $region3
    $region8: #{tpu_custom_call.1} parent=1 // loop_exit
      _
    %2340 = vsyncpa [#allocation3], 1
    %s2341 = scalar_lea.sflag [#allocation3], 1
    %2342 = vsyncpa %s2341, 1
    %2343 = vsyncpa [#allocation6], 1
    %s2344 = scalar_lea.sflag [#allocation6], 1
    %2345 = vsyncpa %s2344, 1
    %2346 = vsyncpa [#allocation9], 1
    %2347 = vsyncpa [#allocation12], 1
    %2348 = vsyncpa [#allocation15], 1
    %2349 = vsyncpa [#allocation4], 1
    %s2350 = scalar_lea.sflag [#allocation4], 1
    %2351 = vsyncpa %s2350, 1

</llo_original>
